<compile_context>
chip_gen: v7x
topology: tpu7x:2x2x1
jax: 0.10.0
libtpu: 0.0.40
codegen_flags: <defaults>
</compile_context>

<pallas_src>
import jax
import jax.numpy as jnp
from jax.experimental import pallas as pl
from jax.experimental.pallas import tpu as pltpu


def _round_up(x, m):
    return ((x + m - 1) // m) * m


def gru_encoder_kernel(maxlen_ref, gx_ref, len_ref, whh_ref, bhn_ref,
                       h_out_ref, h_scratch):
    """One time-block of the GRU recurrence.

    maxlen_ref : (1,) int32 SMEM   max sequence length (scalar prefetch)
    gx_ref     : (Tc, Bb, 3*Hp)    precomputed x@W_ih + folded biases, gate order [r|z|n]
    len_ref    : (Bb, 1) int32     per-sequence lengths
    whh_ref    : (Hp, 3*Hp) bf16   fused hidden->hidden weights [r|z|n]
    bhn_ref    : (1, Hp) f32       hidden bias of the n gate (kept inside r*(.))
    h_out_ref  : (Bb, Hp) f32      final hidden state for this batch block
    h_scratch  : (Bb, Hp) f32      running hidden state (persists across time blocks)
    """
    tb = pl.program_id(1)
    Tc = gx_ref.shape[0]
    Hp = whh_ref.shape[0]

    @pl.when(tb == 0)
    def _():
        h_scratch[...] = jnp.zeros_like(h_scratch)

    t0 = tb * Tc
    max_len = maxlen_ref[0]

    # Skip entire time blocks past the longest sequence.
    @pl.when(t0 < max_len)
    def _():
        lengths = len_ref[...]                                   # (Bb, 1) int32
        w_hh = whh_ref[...]                                      # (Hp, 3Hp) bf16
        b_hn = bhn_ref[...]                                      # (1, Hp)  f32 (hoisted)

        def step(tl, h):
            gx = gx_ref[tl]                                      # (Bb, 3Hp) f32
            gh = jnp.dot(h.astype(jnp.bfloat16), w_hh,
                         preferred_element_type=jnp.float32)     # (Bb, 3Hp) f32 acc
            r = jax.nn.sigmoid(gx[:, 0:Hp] + gh[:, 0:Hp])
            z = jax.nn.sigmoid(gx[:, Hp:2 * Hp] + gh[:, Hp:2 * Hp])
            n = jnp.tanh(gx[:, 2 * Hp:3 * Hp] + r * (gh[:, 2 * Hp:3 * Hp] + b_hn))
            h_new = (1.0 - z) * n + z * h
            # pack_padded_sequence semantics: freeze h once t >= lengths[b]
            valid = lengths > (t0 + tl)                          # (Bb, 1) bool
            return jnp.where(valid, h_new, h)

        h_scratch[...] = jax.lax.fori_loop(0, Tc, step, h_scratch[...], unroll=True)

    @pl.when(tb == pl.num_programs(1) - 1)
    def _():
        h_out_ref[...] = h_scratch[...].astype(h_out_ref.dtype)


def encoder_forward(tokens, lengths, emb_table, w_ih, w_hh, b_ih, b_hh,
                    *, time_block=32, batch_block=8):
    """tokens: (B, T) int32, lengths: (B,) int32.

    Fused weight layout (gate order [r | z | n] along the last axis):
      w_ih: (E, 3H)   w_hh: (H, 3H)   b_ih: (3H,)   b_hh: (3H,)
    Returns hidden of shape (num_layers=1, B, H), f32.
    """
    B, T = tokens.shape
    H = w_hh.shape[0]

    LANE, SUB = 128, 8
    Hp = _round_up(H, LANE)                    # lane-dense hidden dim
    Bb = max(SUB, _round_up(batch_block, SUB))  # batch tile (sublane multiple)
    Bp = _round_up(B, Bb)
    Tc = max(1, min(time_block, T))            # timesteps per grid step
    Tp = _round_up(T, Tc)

    lengths = lengths.astype(jnp.int32)

    # ---- Non-recurrent projection hoisted out of the kernel: one big GEMM over all T.
    #      Fold b_ih plus b_hh[r], b_hh[z]; b_hh[n] must stay inside the r*(.) term.
    embedded = emb_table[tokens].astype(jnp.float32)                       # (B, T, E)
    b_fold = b_ih + jnp.concatenate(
        [b_hh[0:H], b_hh[H:2 * H], jnp.zeros((H,), b_hh.dtype)])           # (3H,)
    gx = jnp.einsum("bte,eg->btg", embedded, w_ih.astype(jnp.float32)) + b_fold  # (B,T,3H)

    # ---- Pad each gate slice H -> Hp (so in-kernel slices stay 128-aligned), then B, T.
    def pad_gates(a):  # (..., 3H) -> (..., 3Hp)
        parts = []
        for g in range(3):
            p = a[..., g * H:(g + 1) * H]
            parts.append(jnp.pad(p, [(0, 0)] * (a.ndim - 1) + [(0, Hp - H)]))
        return jnp.concatenate(parts, axis=-1)

    gx = pad_gates(gx)                                                     # (B, T, 3Hp)
    gx = jnp.pad(gx, ((0, Bp - B), (0, Tp - T), (0, 0)))
    gx = jnp.transpose(gx, (1, 0, 2))                                      # (Tp, Bp, 3Hp)

    w_hh_p = pad_gates(jnp.pad(w_hh, ((0, Hp - H), (0, 0)))).astype(jnp.bfloat16)  # (Hp,3Hp)
    b_hn_p = jnp.pad(b_hh[2 * H:3 * H], (0, Hp - H)).reshape(1, Hp).astype(jnp.float32)

    len_p = jnp.pad(lengths, (0, Bp - B)).reshape(Bp, 1)                   # (Bp, 1)
    max_len = jnp.max(lengths).reshape(1).astype(jnp.int32)                # (1,) prefetch

    grid = (Bp // Bb, Tp // Tc)

    hidden = pl.pallas_call(
        gru_encoder_kernel,
        out_shape=jax.ShapeDtypeStruct((Bp, Hp), jnp.float32),
        grid_spec=pltpu.PrefetchScalarGridSpec(
            num_scalar_prefetch=1,
            grid=grid,
            in_specs=[
                pl.BlockSpec((Tc, Bb, 3 * Hp), lambda b, t, ml: (t, b, 0)),  # gx block
                pl.BlockSpec((Bb, 1),          lambda b, t, ml: (b, 0)),     # lengths
                pl.BlockSpec((Hp, 3 * Hp),     lambda b, t, ml: (0, 0)),     # W_hh (resident)
                pl.BlockSpec((1, Hp),          lambda b, t, ml: (0, 0)),     # b_hn (resident)
            ],
            out_specs=pl.BlockSpec((Bb, Hp), lambda b, t, ml: (b, 0)),
            scratch_shapes=[pltpu.VMEM((Bb, Hp), jnp.float32)],
        ),
        compiler_params=pltpu.CompilerParams(
            # batch blocks are independent (megacore-shardable); time is sequential.
            dimension_semantics=("parallel", "arbitrary"),
        ),
    )(max_len, gx, len_p, w_hh_p, b_hn_p)

    return hidden[:B, :H].reshape(1, B, H)


def encoder_forward_ref(tokens, lengths, emb_table, w_ih, w_hh, b_ih, b_hh):
    """Pure-JAX f32 reference with identical module semantics."""
    B, T = tokens.shape
    H = w_hh.shape[0]
    x = jnp.transpose(emb_table[tokens], (1, 0, 2)).astype(jnp.float32)  # (T, B, E)

    def step(h, inp):
        x_t, t = inp
        gx = x_t @ w_ih + b_ih
        gh = h @ w_hh + b_hh
        r = jax.nn.sigmoid(gx[:, :H] + gh[:, :H])
        z = jax.nn.sigmoid(gx[:, H:2 * H] + gh[:, H:2 * H])
        n = jnp.tanh(gx[:, 2 * H:] + r * gh[:, 2 * H:])
        h_new = (1.0 - z) * n + z * h
        valid = lengths.reshape(B, 1) > t
        return jnp.where(valid, h_new, h), None

    h0 = jnp.zeros((B, H), jnp.float32)
    h_final, _ = jax.lax.scan(step, h0, (x, jnp.arange(T)))
    return h_final.reshape(1, B, H)


if __name__ == "__main__":
    # Small deterministic config (num_layers=1 GRU, as in the module spec).
    vocab_size, emb_dim, hidden_dim = 16, 32, 32
    B, T = 2, 8

    key = jax.random.PRNGKey(0)
    k_emb, k_wih, k_whh, k_bih, k_bhh, k_tok = jax.random.split(key, 6)

    # Parameters: embedding ~ N(0,1) with padding row zeroed; GRU params uniform(-1/sqrt(H), 1/sqrt(H)).
    emb_table = jax.random.normal(k_emb, (vocab_size, emb_dim), jnp.float32)
    emb_table = emb_table.at[0].set(0.0)  # padding_idx=0

    bound = 1.0 / jnp.sqrt(jnp.float32(hidden_dim))
    # Fused gate layout [r | z | n] on the last axis (pre-transposed so x @ W works directly).
    w_ih = jax.random.uniform(k_wih, (emb_dim, 3 * hidden_dim), jnp.float32, -bound, bound)
    w_hh = jax.random.uniform(k_whh, (hidden_dim, 3 * hidden_dim), jnp.float32, -bound, bound)
    b_ih = jax.random.uniform(k_bih, (3 * hidden_dim,), jnp.float32, -bound, bound)
    b_hh = jax.random.uniform(k_bhh, (3 * hidden_dim,), jnp.float32, -bound, bound)

    # Inputs: token ids (0 = padding), per-sequence lengths.
    lengths = jnp.array([T, 5], dtype=jnp.int32)
    tokens = jax.random.randint(k_tok, (B, T), 1, vocab_size, dtype=jnp.int32)
    time_idx = jnp.arange(T)[None, :]
    tokens = jnp.where(time_idx < lengths[:, None], tokens, 0)  # pad tail with token 0

    fwd = jax.jit(encoder_forward)
    hidden = fwd(tokens, lengths, emb_table, w_ih, w_hh, b_ih, b_hh)
    hidden = jax.block_until_ready(hidden)

    hidden_ref = encoder_forward_ref(tokens, lengths, emb_table, w_ih, w_hh, b_ih, b_hh)
    assert hidden.shape == (1, B, hidden_dim)
    # Recurrent matmul runs with bf16 operands / f32 accumulation -> loose tolerance vs f32 ref.
    assert jnp.allclose(hidden, hidden_ref, atol=2e-2, rtol=2e-2), "mismatch vs reference"

    print("KERNEL_OK")
</pallas_src>

<mosaic_0001>
module attributes {stable_mosaic.version = 11 : i64} {
  func.func @gru_encoder_kernel(%arg0: i32, %arg1: i32, %arg2: memref<1xi32, #tpu.memory_space<smem>>, %arg3: memref<8x8x384xf32, #tpu.memory_space<vmem>>, %arg4: memref<8x1xi32, #tpu.memory_space<vmem>>, %arg5: memref<128x384xbf16, #tpu.memory_space<vmem>>, %arg6: memref<1x128xf32, #tpu.memory_space<vmem>>, %arg7: memref<8x128xf32, #tpu.memory_space<vmem>>, %arg8: memref<8x128xf32, #tpu.memory_space<vmem>>) attributes {dimension_semantics = [#tpu.dimension_semantics<parallel>, #tpu.dimension_semantics<arbitrary>], iteration_bounds = array<i64: 1, 1>, scalar_prefetch = 1 : i64, scratch_operands = 1 : i64, tpu.core_type = #tpu.core_type<tc>, window_params = [{transform_indices = @transform_0, window_bounds = array<i64: 8, 8, 384>}, {transform_indices = @transform_1, window_bounds = array<i64: 8, 1>}, {pipeline_mode = #tpu.pipeline_mode<synchronous>, transform_indices = @transform_2, window_bounds = array<i64: 128, 384>}, {pipeline_mode = #tpu.pipeline_mode<synchronous>, transform_indices = @transform_3, window_bounds = array<i64: 1, 128>}, {transform_indices = @transform_4, window_bounds = array<i64: 8, 128>}]} {
    %c0_i32 = arith.constant 0 : i32
    %0 = arith.cmpi eq, %arg1, %c0_i32 : i32
    %1 = arith.extui %0 : i1 to i32
    %c0_i32_0 = arith.constant 0 : i32
    %2 = arith.cmpi ne, %1, %c0_i32_0 : i32
    scf.if %2 {
      %cst = arith.constant 0.000000e+00 : f32
      %11 = vector.broadcast %cst : f32 to vector<8x128xf32>
      %c0_4 = arith.constant 0 : index
      %c0_5 = arith.constant 0 : index
      %12 = vector.load %arg8[%c0_4, %c0_5] : memref<8x128xf32, #tpu.memory_space<vmem>>, vector<8x128xf32>
      tpu.vector_store %arg8[%c0_4, %c0_5], %11 {strides = array<i32>} : memref<8x128xf32, #tpu.memory_space<vmem>>, vector<8x128xf32>,
    } else {
    }
    %c8_i32 = arith.constant 8 : i32
    %3 = arith.muli %arg1, %c8_i32 : i32
    %c0 = arith.constant 0 : index
    %4 = memref.load %arg2[%c0] : memref<1xi32, #tpu.memory_space<smem>>
    %5 = arith.cmpi slt, %3, %4 : i32
    %6 = arith.extui %5 : i1 to i32
    %c0_i32_1 = arith.constant 0 : i32
    %7 = arith.cmpi ne, %6, %c0_i32_1 : i32
    scf.if %7 {
      %c0_4 = arith.constant 0 : index
      %c0_5 = arith.constant 0 : index
      %11 = vector.load %arg4[%c0_4, %c0_5] : memref<8x1xi32, #tpu.memory_space<vmem>>, vector<8x1xi32>
      %c0_6 = arith.constant 0 : index
      %c0_7 = arith.constant 0 : index
      %12 = vector.load %arg5[%c0_6, %c0_7] : memref<128x384xbf16, #tpu.memory_space<vmem>>, vector<128x384xbf16>
      %c0_8 = arith.constant 0 : index
      %c0_9 = arith.constant 0 : index
      %13 = vector.load %arg6[%c0_8, %c0_9] : memref<1x128xf32, #tpu.memory_space<vmem>>, vector<1x128xf32>
      %c0_10 = arith.constant 0 : index
      %c0_11 = arith.constant 0 : index
      %14 = vector.load %arg8[%c0_10, %c0_11] : memref<8x128xf32, #tpu.memory_space<vmem>>, vector<8x128xf32>
      %c0_i32_12 = arith.constant 0 : i32
      %15 = arith.index_cast %c0_i32_12 : i32 to index
      %c0_13 = arith.constant 0 : index
      %c0_14 = arith.constant 0 : index
      %16 = vector.load %arg3[%15, %c0_13, %c0_14] : memref<8x8x384xf32, #tpu.memory_space<vmem>>, vector<1x8x384xf32>
      %17 = vector.shape_cast %16 : vector<1x8x384xf32> to vector<8x384xf32>
      %18 = arith.truncf %14 : vector<8x128xf32> to vector<8x128xbf16>
      %cst = arith.constant dense<0.000000e+00> : vector<8x384xf32>
      %19 = tpu.matmul %18, %12, %cst {dimension_numbers = #tpu.dot_dimension_numbers<[1], [0], [0], [1], [0, 0, 1, 1], [], []>} : vector<8x128xbf16>, vector<128x384xbf16>, vector<8x384xf32> -> vector<8x384xf32>
      %20 = vector.extract_strided_slice %17 {offsets = [0, 0], sizes = [8, 128], strides = [1, 1]} : vector<8x384xf32> to vector<8x128xf32>
      %21 = vector.extract_strided_slice %19 {offsets = [0, 0], sizes = [8, 128], strides = [1, 1]} : vector<8x384xf32> to vector<8x128xf32>
      %22 = arith.addf %20, %21 : vector<8x128xf32>
      %23 = arith.negf %22 : vector<8x128xf32>
      %24 = math.exp %23 : vector<8x128xf32>
      %cst_15 = arith.constant 1.000000e+00 : f32
      %25 = vector.broadcast %cst_15 : f32 to vector<8x128xf32>
      %26 = arith.addf %25, %24 : vector<8x128xf32>
      %27 = arith.divf %25, %26 : vector<8x128xf32>
      %28 = vector.extract_strided_slice %17 {offsets = [0, 128], sizes = [8, 128], strides = [1, 1]} : vector<8x384xf32> to vector<8x128xf32>
      %29 = vector.extract_strided_slice %19 {offsets = [0, 128], sizes = [8, 128], strides = [1, 1]} : vector<8x384xf32> to vector<8x128xf32>
      %30 = arith.addf %28, %29 : vector<8x128xf32>
      %31 = arith.negf %30 : vector<8x128xf32>
      %32 = math.exp %31 : vector<8x128xf32>
      %cst_16 = arith.constant 1.000000e+00 : f32
      %33 = vector.broadcast %cst_16 : f32 to vector<8x128xf32>
      %34 = arith.addf %33, %32 : vector<8x128xf32>
      %35 = arith.divf %33, %34 : vector<8x128xf32>
      %36 = vector.extract_strided_slice %17 {offsets = [0, 256], sizes = [8, 128], strides = [1, 1]} : vector<8x384xf32> to vector<8x128xf32>
      %37 = vector.extract_strided_slice %19 {offsets = [0, 256], sizes = [8, 128], strides = [1, 1]} : vector<8x384xf32> to vector<8x128xf32>
      %38 = vector.broadcast %13 : vector<1x128xf32> to vector<8x128xf32>
      %39 = arith.addf %37, %38 : vector<8x128xf32>
      %40 = arith.mulf %27, %39 : vector<8x128xf32>
      %41 = arith.addf %36, %40 : vector<8x128xf32>
      %42 = math.tanh %41 : vector<8x128xf32>
      %cst_17 = arith.constant 1.000000e+00 : f32
      %43 = vector.broadcast %cst_17 : f32 to vector<8x128xf32>
      %44 = arith.subf %43, %35 : vector<8x128xf32>
      %45 = arith.mulf %44, %42 : vector<8x128xf32>
      %46 = arith.mulf %35, %14 : vector<8x128xf32>
      %47 = arith.addf %45, %46 : vector<8x128xf32>
      %48 = arith.addi %3, %c0_i32_12 : i32
      %49 = vector.broadcast %48 : i32 to vector<8x1xi32>
      %50 = arith.cmpi sgt, %11, %49 : vector<8x1xi32>
      %51 = vector.shape_cast %50 : vector<8x1xi1> to vector<8x1xi1>
      %52 = vector.broadcast %51 : vector<8x1xi1> to vector<8x128xi1>
      %53 = arith.select %52, %47, %14 : vector<8x128xi1>, vector<8x128xf32>
      %c1_i32 = arith.constant 1 : i32
      %54 = arith.index_cast %c1_i32 : i32 to index
      %c0_18 = arith.constant 0 : index
      %c0_19 = arith.constant 0 : index
      %55 = vector.load %arg3[%54, %c0_18, %c0_19] : memref<8x8x384xf32, #tpu.memory_space<vmem>>, vector<1x8x384xf32>
      %56 = vector.shape_cast %55 : vector<1x8x384xf32> to vector<8x384xf32>
      %57 = arith.truncf %53 : vector<8x128xf32> to vector<8x128xbf16>
      %cst_20 = arith.constant dense<0.000000e+00> : vector<8x384xf32>
      %58 = tpu.matmul %57, %12, %cst_20 {dimension_numbers = #tpu.dot_dimension_numbers<[1], [0], [0], [1], [0, 0, 1, 1], [], []>} : vector<8x128xbf16>, vector<128x384xbf16>, vector<8x384xf32> -> vector<8x384xf32>
      %59 = vector.extract_strided_slice %56 {offsets = [0, 0], sizes = [8, 128], strides = [1, 1]} : vector<8x384xf32> to vector<8x128xf32>
      %60 = vector.extract_strided_slice %58 {offsets = [0, 0], sizes = [8, 128], strides = [1, 1]} : vector<8x384xf32> to vector<8x128xf32>
      %61 = arith.addf %59, %60 : vector<8x128xf32>
      %62 = arith.negf %61 : vector<8x128xf32>
      %63 = math.exp %62 : vector<8x128xf32>
      %cst_21 = arith.constant 1.000000e+00 : f32
      %64 = vector.broadcast %cst_21 : f32 to vector<8x128xf32>
      %65 = arith.addf %64, %63 : vector<8x128xf32>
      %66 = arith.divf %64, %65 : vector<8x128xf32>
      %67 = vector.extract_strided_slice %56 {offsets = [0, 128], sizes = [8, 128], strides = [1, 1]} : vector<8x384xf32> to vector<8x128xf32>
      %68 = vector.extract_strided_slice %58 {offsets = [0, 128], sizes = [8, 128], strides = [1, 1]} : vector<8x384xf32> to vector<8x128xf32>
      %69 = arith.addf %67, %68 : vector<8x128xf32>
      %70 = arith.negf %69 : vector<8x128xf32>
      %71 = math.exp %70 : vector<8x128xf32>
      %cst_22 = arith.constant 1.000000e+00 : f32
      %72 = vector.broadcast %cst_22 : f32 to vector<8x128xf32>
      %73 = arith.addf %72, %71 : vector<8x128xf32>
      %74 = arith.divf %72, %73 : vector<8x128xf32>
      %75 = vector.extract_strided_slice %56 {offsets = [0, 256], sizes = [8, 128], strides = [1, 1]} : vector<8x384xf32> to vector<8x128xf32>
      %76 = vector.extract_strided_slice %58 {offsets = [0, 256], sizes = [8, 128], strides = [1, 1]} : vector<8x384xf32> to vector<8x128xf32>
      %77 = vector.broadcast %13 : vector<1x128xf32> to vector<8x128xf32>
      %78 = arith.addf %76, %77 : vector<8x128xf32>
      %79 = arith.mulf %66, %78 : vector<8x128xf32>
      %80 = arith.addf %75, %79 : vector<8x128xf32>
      %81 = math.tanh %80 : vector<8x128xf32>
      %cst_23 = arith.constant 1.000000e+00 : f32
      %82 = vector.broadcast %cst_23 : f32 to vector<8x128xf32>
      %83 = arith.subf %82, %74 : vector<8x128xf32>
      %84 = arith.mulf %83, %81 : vector<8x128xf32>
      %85 = arith.mulf %74, %53 : vector<8x128xf32>
      %86 = arith.addf %84, %85 : vector<8x128xf32>
      %87 = arith.addi %3, %c1_i32 : i32
      %88 = vector.broadcast %87 : i32 to vector<8x1xi32>
      %89 = arith.cmpi sgt, %11, %88 : vector<8x1xi32>
      %90 = vector.shape_cast %89 : vector<8x1xi1> to vector<8x1xi1>
      %91 = vector.broadcast %90 : vector<8x1xi1> to vector<8x128xi1>
      %92 = arith.select %91, %86, %53 : vector<8x128xi1>, vector<8x128xf32>
      %c2_i32 = arith.constant 2 : i32
      %93 = arith.index_cast %c2_i32 : i32 to index
      %c0_24 = arith.constant 0 : index
      %c0_25 = arith.constant 0 : index
      %94 = vector.load %arg3[%93, %c0_24, %c0_25] : memref<8x8x384xf32, #tpu.memory_space<vmem>>, vector<1x8x384xf32>
      %95 = vector.shape_cast %94 : vector<1x8x384xf32> to vector<8x384xf32>
      %96 = arith.truncf %92 : vector<8x128xf32> to vector<8x128xbf16>
      %cst_26 = arith.constant dense<0.000000e+00> : vector<8x384xf32>
      %97 = tpu.matmul %96, %12, %cst_26 {dimension_numbers = #tpu.dot_dimension_numbers<[1], [0], [0], [1], [0, 0, 1, 1], [], []>} : vector<8x128xbf16>, vector<128x384xbf16>, vector<8x384xf32> -> vector<8x384xf32>
      %98 = vector.extract_strided_slice %95 {offsets = [0, 0], sizes = [8, 128], strides = [1, 1]} : vector<8x384xf32> to vector<8x128xf32>
      %99 = vector.extract_strided_slice %97 {offsets = [0, 0], sizes = [8, 128], strides = [1, 1]} : vector<8x384xf32> to vector<8x128xf32>
      %100 = arith.addf %98, %99 : vector<8x128xf32>
      %101 = arith.negf %100 : vector<8x128xf32>
      %102 = math.exp %101 : vector<8x128xf32>
      %cst_27 = arith.constant 1.000000e+00 : f32
      %103 = vector.broadcast %cst_27 : f32 to vector<8x128xf32>
      %104 = arith.addf %103, %102 : vector<8x128xf32>
      %105 = arith.divf %103, %104 : vector<8x128xf32>
      %106 = vector.extract_strided_slice %95 {offsets = [0, 128], sizes = [8, 128], strides = [1, 1]} : vector<8x384xf32> to vector<8x128xf32>
      %107 = vector.extract_strided_slice %97 {offsets = [0, 128], sizes = [8, 128], strides = [1, 1]} : vector<8x384xf32> to vector<8x128xf32>
      %108 = arith.addf %106, %107 : vector<8x128xf32>
      %109 = arith.negf %108 : vector<8x128xf32>
      %110 = math.exp %109 : vector<8x128xf32>
      %cst_28 = arith.constant 1.000000e+00 : f32
      %111 = vector.broadcast %cst_28 : f32 to vector<8x128xf32>
      %112 = arith.addf %111, %110 : vector<8x128xf32>
      %113 = arith.divf %111, %112 : vector<8x128xf32>
      %114 = vector.extract_strided_slice %95 {offsets = [0, 256], sizes = [8, 128], strides = [1, 1]} : vector<8x384xf32> to vector<8x128xf32>
      %115 = vector.extract_strided_slice %97 {offsets = [0, 256], sizes = [8, 128], strides = [1, 1]} : vector<8x384xf32> to vector<8x128xf32>
      %116 = vector.broadcast %13 : vector<1x128xf32> to vector<8x128xf32>
      %117 = arith.addf %115, %116 : vector<8x128xf32>
      %118 = arith.mulf %105, %117 : vector<8x128xf32>
      %119 = arith.addf %114, %118 : vector<8x128xf32>
      %120 = math.tanh %119 : vector<8x128xf32>
      %cst_29 = arith.constant 1.000000e+00 : f32
      %121 = vector.broadcast %cst_29 : f32 to vector<8x128xf32>
      %122 = arith.subf %121, %113 : vector<8x128xf32>
      %123 = arith.mulf %122, %120 : vector<8x128xf32>
      %124 = arith.mulf %113, %92 : vector<8x128xf32>
      %125 = arith.addf %123, %124 : vector<8x128xf32>
      %126 = arith.addi %3, %c2_i32 : i32
      %127 = vector.broadcast %126 : i32 to vector<8x1xi32>
      %128 = arith.cmpi sgt, %11, %127 : vector<8x1xi32>
      %129 = vector.shape_cast %128 : vector<8x1xi1> to vector<8x1xi1>
      %130 = vector.broadcast %129 : vector<8x1xi1> to vector<8x128xi1>
      %131 = arith.select %130, %125, %92 : vector<8x128xi1>, vector<8x128xf32>
      %c3_i32 = arith.constant 3 : i32
      %132 = arith.index_cast %c3_i32 : i32 to index
      %c0_30 = arith.constant 0 : index
      %c0_31 = arith.constant 0 : index
      %133 = vector.load %arg3[%132, %c0_30, %c0_31] : memref<8x8x384xf32, #tpu.memory_space<vmem>>, vector<1x8x384xf32>
      %134 = vector.shape_cast %133 : vector<1x8x384xf32> to vector<8x384xf32>
      %135 = arith.truncf %131 : vector<8x128xf32> to vector<8x128xbf16>
      %cst_32 = arith.constant dense<0.000000e+00> : vector<8x384xf32>
      %136 = tpu.matmul %135, %12, %cst_32 {dimension_numbers = #tpu.dot_dimension_numbers<[1], [0], [0], [1], [0, 0, 1, 1], [], []>} : vector<8x128xbf16>, vector<128x384xbf16>, vector<8x384xf32> -> vector<8x384xf32>
      %137 = vector.extract_strided_slice %134 {offsets = [0, 0], sizes = [8, 128], strides = [1, 1]} : vector<8x384xf32> to vector<8x128xf32>
      %138 = vector.extract_strided_slice %136 {offsets = [0, 0], sizes = [8, 128], strides = [1, 1]} : vector<8x384xf32> to vector<8x128xf32>
      %139 = arith.addf %137, %138 : vector<8x128xf32>
      %140 = arith.negf %139 : vector<8x128xf32>
      %141 = math.exp %140 : vector<8x128xf32>
      %cst_33 = arith.constant 1.000000e+00 : f32
      %142 = vector.broadcast %cst_33 : f32 to vector<8x128xf32>
      %143 = arith.addf %142, %141 : vector<8x128xf32>
      %144 = arith.divf %142, %143 : vector<8x128xf32>
      %145 = vector.extract_strided_slice %134 {offsets = [0, 128], sizes = [8, 128], strides = [1, 1]} : vector<8x384xf32> to vector<8x128xf32>
      %146 = vector.extract_strided_slice %136 {offsets = [0, 128], sizes = [8, 128], strides = [1, 1]} : vector<8x384xf32> to vector<8x128xf32>
      %147 = arith.addf %145, %146 : vector<8x128xf32>
      %148 = arith.negf %147 : vector<8x128xf32>
      %149 = math.exp %148 : vector<8x128xf32>
      %cst_34 = arith.constant 1.000000e+00 : f32
      %150 = vector.broadcast %cst_34 : f32 to vector<8x128xf32>
      %151 = arith.addf %150, %149 : vector<8x128xf32>
      %152 = arith.divf %150, %151 : vector<8x128xf32>
      %153 = vector.extract_strided_slice %134 {offsets = [0, 256], sizes = [8, 128], strides = [1, 1]} : vector<8x384xf32> to vector<8x128xf32>
      %154 = vector.extract_strided_slice %136 {offsets = [0, 256], sizes = [8, 128], strides = [1, 1]} : vector<8x384xf32> to vector<8x128xf32>
      %155 = vector.broadcast %13 : vector<1x128xf32> to vector<8x128xf32>
      %156 = arith.addf %154, %155 : vector<8x128xf32>
      %157 = arith.mulf %144, %156 : vector<8x128xf32>
      %158 = arith.addf %153, %157 : vector<8x128xf32>
      %159 = math.tanh %158 : vector<8x128xf32>
      %cst_35 = arith.constant 1.000000e+00 : f32
      %160 = vector.broadcast %cst_35 : f32 to vector<8x128xf32>
      %161 = arith.subf %160, %152 : vector<8x128xf32>
      %162 = arith.mulf %161, %159 : vector<8x128xf32>
      %163 = arith.mulf %152, %131 : vector<8x128xf32>
      %164 = arith.addf %162, %163 : vector<8x128xf32>
      %165 = arith.addi %3, %c3_i32 : i32
      %166 = vector.broadcast %165 : i32 to vector<8x1xi32>
      %167 = arith.cmpi sgt, %11, %166 : vector<8x1xi32>
      %168 = vector.shape_cast %167 : vector<8x1xi1> to vector<8x1xi1>
      %169 = vector.broadcast %168 : vector<8x1xi1> to vector<8x128xi1>
      %170 = arith.select %169, %164, %131 : vector<8x128xi1>, vector<8x128xf32>
      %c4_i32 = arith.constant 4 : i32
      %171 = arith.index_cast %c4_i32 : i32 to index
      %c0_36 = arith.constant 0 : index
      %c0_37 = arith.constant 0 : index
      %172 = vector.load %arg3[%171, %c0_36, %c0_37] : memref<8x8x384xf32, #tpu.memory_space<vmem>>, vector<1x8x384xf32>
      %173 = vector.shape_cast %172 : vector<1x8x384xf32> to vector<8x384xf32>
      %174 = arith.truncf %170 : vector<8x128xf32> to vector<8x128xbf16>
      %cst_38 = arith.constant dense<0.000000e+00> : vector<8x384xf32>
      %175 = tpu.matmul %174, %12, %cst_38 {dimension_numbers = #tpu.dot_dimension_numbers<[1], [0], [0], [1], [0, 0, 1, 1], [], []>} : vector<8x128xbf16>, vector<128x384xbf16>, vector<8x384xf32> -> vector<8x384xf32>
      %176 = vector.extract_strided_slice %173 {offsets = [0, 0], sizes = [8, 128], strides = [1, 1]} : vector<8x384xf32> to vector<8x128xf32>
      %177 = vector.extract_strided_slice %175 {offsets = [0, 0], sizes = [8, 128], strides = [1, 1]} : vector<8x384xf32> to vector<8x128xf32>
      %178 = arith.addf %176, %177 : vector<8x128xf32>
      %179 = arith.negf %178 : vector<8x128xf32>
      %180 = math.exp %179 : vector<8x128xf32>
      %cst_39 = arith.constant 1.000000e+00 : f32
      %181 = vector.broadcast %cst_39 : f32 to vector<8x128xf32>
      %182 = arith.addf %181, %180 : vector<8x128xf32>
      %183 = arith.divf %181, %182 : vector<8x128xf32>
      %184 = vector.extract_strided_slice %173 {offsets = [0, 128], sizes = [8, 128], strides = [1, 1]} : vector<8x384xf32> to vector<8x128xf32>
      %185 = vector.extract_strided_slice %175 {offsets = [0, 128], sizes = [8, 128], strides = [1, 1]} : vector<8x384xf32> to vector<8x128xf32>
      %186 = arith.addf %184, %185 : vector<8x128xf32>
      %187 = arith.negf %186 : vector<8x128xf32>
      %188 = math.exp %187 : vector<8x128xf32>
      %cst_40 = arith.constant 1.000000e+00 : f32
      %189 = vector.broadcast %cst_40 : f32 to vector<8x128xf32>
      %190 = arith.addf %189, %188 : vector<8x128xf32>
      %191 = arith.divf %189, %190 : vector<8x128xf32>
      %192 = vector.extract_strided_slice %173 {offsets = [0, 256], sizes = [8, 128], strides = [1, 1]} : vector<8x384xf32> to vector<8x128xf32>
      %193 = vector.extract_strided_slice %175 {offsets = [0, 256], sizes = [8, 128], strides = [1, 1]} : vector<8x384xf32> to vector<8x128xf32>
      %194 = vector.broadcast %13 : vector<1x128xf32> to vector<8x128xf32>
      %195 = arith.addf %193, %194 : vector<8x128xf32>
      %196 = arith.mulf %183, %195 : vector<8x128xf32>
      %197 = arith.addf %192, %196 : vector<8x128xf32>
      %198 = math.tanh %197 : vector<8x128xf32>
      %cst_41 = arith.constant 1.000000e+00 : f32
      %199 = vector.broadcast %cst_41 : f32 to vector<8x128xf32>
      %200 = arith.subf %199, %191 : vector<8x128xf32>
      %201 = arith.mulf %200, %198 : vector<8x128xf32>
      %202 = arith.mulf %191, %170 : vector<8x128xf32>
      %203 = arith.addf %201, %202 : vector<8x128xf32>
      %204 = arith.addi %3, %c4_i32 : i32
      %205 = vector.broadcast %204 : i32 to vector<8x1xi32>
      %206 = arith.cmpi sgt, %11, %205 : vector<8x1xi32>
      %207 = vector.shape_cast %206 : vector<8x1xi1> to vector<8x1xi1>
      %208 = vector.broadcast %207 : vector<8x1xi1> to vector<8x128xi1>
      %209 = arith.select %208, %203, %170 : vector<8x128xi1>, vector<8x128xf32>
      %c5_i32 = arith.constant 5 : i32
      %210 = arith.index_cast %c5_i32 : i32 to index
      %c0_42 = arith.constant 0 : index
      %c0_43 = arith.constant 0 : index
      %211 = vector.load %arg3[%210, %c0_42, %c0_43] : memref<8x8x384xf32, #tpu.memory_space<vmem>>, vector<1x8x384xf32>
      %212 = vector.shape_cast %211 : vector<1x8x384xf32> to vector<8x384xf32>
      %213 = arith.truncf %209 : vector<8x128xf32> to vector<8x128xbf16>
      %cst_44 = arith.constant dense<0.000000e+00> : vector<8x384xf32>
      %214 = tpu.matmul %213, %12, %cst_44 {dimension_numbers = #tpu.dot_dimension_numbers<[1], [0], [0], [1], [0, 0, 1, 1], [], []>} : vector<8x128xbf16>, vector<128x384xbf16>, vector<8x384xf32> -> vector<8x384xf32>
      %215 = vector.extract_strided_slice %212 {offsets = [0, 0], sizes = [8, 128], strides = [1, 1]} : vector<8x384xf32> to vector<8x128xf32>
      %216 = vector.extract_strided_slice %214 {offsets = [0, 0], sizes = [8, 128], strides = [1, 1]} : vector<8x384xf32> to vector<8x128xf32>
      %217 = arith.addf %215, %216 : vector<8x128xf32>
      %218 = arith.negf %217 : vector<8x128xf32>
      %219 = math.exp %218 : vector<8x128xf32>
      %cst_45 = arith.constant 1.000000e+00 : f32
      %220 = vector.broadcast %cst_45 : f32 to vector<8x128xf32>
      %221 = arith.addf %220, %219 : vector<8x128xf32>
      %222 = arith.divf %220, %221 : vector<8x128xf32>
      %223 = vector.extract_strided_slice %212 {offsets = [0, 128], sizes = [8, 128], strides = [1, 1]} : vector<8x384xf32> to vector<8x128xf32>
      %224 = vector.extract_strided_slice %214 {offsets = [0, 128], sizes = [8, 128], strides = [1, 1]} : vector<8x384xf32> to vector<8x128xf32>
      %225 = arith.addf %223, %224 : vector<8x128xf32>
      %226 = arith.negf %225 : vector<8x128xf32>
      %227 = math.exp %226 : vector<8x128xf32>
      %cst_46 = arith.constant 1.000000e+00 : f32
      %228 = vector.broadcast %cst_46 : f32 to vector<8x128xf32>
      %229 = arith.addf %228, %227 : vector<8x128xf32>
      %230 = arith.divf %228, %229 : vector<8x128xf32>
      %231 = vector.extract_strided_slice %212 {offsets = [0, 256], sizes = [8, 128], strides = [1, 1]} : vector<8x384xf32> to vector<8x128xf32>
      %232 = vector.extract_strided_slice %214 {offsets = [0, 256], sizes = [8, 128], strides = [1, 1]} : vector<8x384xf32> to vector<8x128xf32>
      %233 = vector.broadcast %13 : vector<1x128xf32> to vector<8x128xf32>
      %234 = arith.addf %232, %233 : vector<8x128xf32>
      %235 = arith.mulf %222, %234 : vector<8x128xf32>
      %236 = arith.addf %231, %235 : vector<8x128xf32>
      %237 = math.tanh %236 : vector<8x128xf32>
      %cst_47 = arith.constant 1.000000e+00 : f32
      %238 = vector.broadcast %cst_47 : f32 to vector<8x128xf32>
      %239 = arith.subf %238, %230 : vector<8x128xf32>
      %240 = arith.mulf %239, %237 : vector<8x128xf32>
      %241 = arith.mulf %230, %209 : vector<8x128xf32>
      %242 = arith.addf %240, %241 : vector<8x128xf32>
      %243 = arith.addi %3, %c5_i32 : i32
      %244 = vector.broadcast %243 : i32 to vector<8x1xi32>
      %245 = arith.cmpi sgt, %11, %244 : vector<8x1xi32>
      %246 = vector.shape_cast %245 : vector<8x1xi1> to vector<8x1xi1>
      %247 = vector.broadcast %246 : vector<8x1xi1> to vector<8x128xi1>
      %248 = arith.select %247, %242, %209 : vector<8x128xi1>, vector<8x128xf32>
      %c6_i32 = arith.constant 6 : i32
      %249 = arith.index_cast %c6_i32 : i32 to index
      %c0_48 = arith.constant 0 : index
      %c0_49 = arith.constant 0 : index
      %250 = vector.load %arg3[%249, %c0_48, %c0_49] : memref<8x8x384xf32, #tpu.memory_space<vmem>>, vector<1x8x384xf32>
      %251 = vector.shape_cast %250 : vector<1x8x384xf32> to vector<8x384xf32>
      %252 = arith.truncf %248 : vector<8x128xf32> to vector<8x128xbf16>
      %cst_50 = arith.constant dense<0.000000e+00> : vector<8x384xf32>
      %253 = tpu.matmul %252, %12, %cst_50 {dimension_numbers = #tpu.dot_dimension_numbers<[1], [0], [0], [1], [0, 0, 1, 1], [], []>} : vector<8x128xbf16>, vector<128x384xbf16>, vector<8x384xf32> -> vector<8x384xf32>
      %254 = vector.extract_strided_slice %251 {offsets = [0, 0], sizes = [8, 128], strides = [1, 1]} : vector<8x384xf32> to vector<8x128xf32>
      %255 = vector.extract_strided_slice %253 {offsets = [0, 0], sizes = [8, 128], strides = [1, 1]} : vector<8x384xf32> to vector<8x128xf32>
      %256 = arith.addf %254, %255 : vector<8x128xf32>
      %257 = arith.negf %256 : vector<8x128xf32>
      %258 = math.exp %257 : vector<8x128xf32>
      %cst_51 = arith.constant 1.000000e+00 : f32
      %259 = vector.broadcast %cst_51 : f32 to vector<8x128xf32>
      %260 = arith.addf %259, %258 : vector<8x128xf32>
      %261 = arith.divf %259, %260 : vector<8x128xf32>
      %262 = vector.extract_strided_slice %251 {offsets = [0, 128], sizes = [8, 128], strides = [1, 1]} : vector<8x384xf32> to vector<8x128xf32>
      %263 = vector.extract_strided_slice %253 {offsets = [0, 128], sizes = [8, 128], strides = [1, 1]} : vector<8x384xf32> to vector<8x128xf32>
      %264 = arith.addf %262, %263 : vector<8x128xf32>
      %265 = arith.negf %264 : vector<8x128xf32>
      %266 = math.exp %265 : vector<8x128xf32>
      %cst_52 = arith.constant 1.000000e+00 : f32
      %267 = vector.broadcast %cst_52 : f32 to vector<8x128xf32>
      %268 = arith.addf %267, %266 : vector<8x128xf32>
      %269 = arith.divf %267, %268 : vector<8x128xf32>
      %270 = vector.extract_strided_slice %251 {offsets = [0, 256], sizes = [8, 128], strides = [1, 1]} : vector<8x384xf32> to vector<8x128xf32>
      %271 = vector.extract_strided_slice %253 {offsets = [0, 256], sizes = [8, 128], strides = [1, 1]} : vector<8x384xf32> to vector<8x128xf32>
      %272 = vector.broadcast %13 : vector<1x128xf32> to vector<8x128xf32>
      %273 = arith.addf %271, %272 : vector<8x128xf32>
      %274 = arith.mulf %261, %273 : vector<8x128xf32>
      %275 = arith.addf %270, %274 : vector<8x128xf32>
      %276 = math.tanh %275 : vector<8x128xf32>
      %cst_53 = arith.constant 1.000000e+00 : f32
      %277 = vector.broadcast %cst_53 : f32 to vector<8x128xf32>
      %278 = arith.subf %277, %269 : vector<8x128xf32>
      %279 = arith.mulf %278, %276 : vector<8x128xf32>
      %280 = arith.mulf %269, %248 : vector<8x128xf32>
      %281 = arith.addf %279, %280 : vector<8x128xf32>
      %282 = arith.addi %3, %c6_i32 : i32
      %283 = vector.broadcast %282 : i32 to vector<8x1xi32>
      %284 = arith.cmpi sgt, %11, %283 : vector<8x1xi32>
      %285 = vector.shape_cast %284 : vector<8x1xi1> to vector<8x1xi1>
      %286 = vector.broadcast %285 : vector<8x1xi1> to vector<8x128xi1>
      %287 = arith.select %286, %281, %248 : vector<8x128xi1>, vector<8x128xf32>
      %c7_i32 = arith.constant 7 : i32
      %288 = arith.index_cast %c7_i32 : i32 to index
      %c0_54 = arith.constant 0 : index
      %c0_55 = arith.constant 0 : index
      %289 = vector.load %arg3[%288, %c0_54, %c0_55] : memref<8x8x384xf32, #tpu.memory_space<vmem>>, vector<1x8x384xf32>
      %290 = vector.shape_cast %289 : vector<1x8x384xf32> to vector<8x384xf32>
      %291 = arith.truncf %287 : vector<8x128xf32> to vector<8x128xbf16>
      %cst_56 = arith.constant dense<0.000000e+00> : vector<8x384xf32>
      %292 = tpu.matmul %291, %12, %cst_56 {dimension_numbers = #tpu.dot_dimension_numbers<[1], [0], [0], [1], [0, 0, 1, 1], [], []>} : vector<8x128xbf16>, vector<128x384xbf16>, vector<8x384xf32> -> vector<8x384xf32>
      %293 = vector.extract_strided_slice %290 {offsets = [0, 0], sizes = [8, 128], strides = [1, 1]} : vector<8x384xf32> to vector<8x128xf32>
      %294 = vector.extract_strided_slice %292 {offsets = [0, 0], sizes = [8, 128], strides = [1, 1]} : vector<8x384xf32> to vector<8x128xf32>
      %295 = arith.addf %293, %294 : vector<8x128xf32>
      %296 = arith.negf %295 : vector<8x128xf32>
      %297 = math.exp %296 : vector<8x128xf32>
      %cst_57 = arith.constant 1.000000e+00 : f32
      %298 = vector.broadcast %cst_57 : f32 to vector<8x128xf32>
      %299 = arith.addf %298, %297 : vector<8x128xf32>
      %300 = arith.divf %298, %299 : vector<8x128xf32>
      %301 = vector.extract_strided_slice %290 {offsets = [0, 128], sizes = [8, 128], strides = [1, 1]} : vector<8x384xf32> to vector<8x128xf32>
      %302 = vector.extract_strided_slice %292 {offsets = [0, 128], sizes = [8, 128], strides = [1, 1]} : vector<8x384xf32> to vector<8x128xf32>
      %303 = arith.addf %301, %302 : vector<8x128xf32>
      %304 = arith.negf %303 : vector<8x128xf32>
      %305 = math.exp %304 : vector<8x128xf32>
      %cst_58 = arith.constant 1.000000e+00 : f32
      %306 = vector.broadcast %cst_58 : f32 to vector<8x128xf32>
      %307 = arith.addf %306, %305 : vector<8x128xf32>
      %308 = arith.divf %306, %307 : vector<8x128xf32>
      %309 = vector.extract_strided_slice %290 {offsets = [0, 256], sizes = [8, 128], strides = [1, 1]} : vector<8x384xf32> to vector<8x128xf32>
      %310 = vector.extract_strided_slice %292 {offsets = [0, 256], sizes = [8, 128], strides = [1, 1]} : vector<8x384xf32> to vector<8x128xf32>
      %311 = vector.broadcast %13 : vector<1x128xf32> to vector<8x128xf32>
      %312 = arith.addf %310, %311 : vector<8x128xf32>
      %313 = arith.mulf %300, %312 : vector<8x128xf32>
      %314 = arith.addf %309, %313 : vector<8x128xf32>
      %315 = math.tanh %314 : vector<8x128xf32>
      %cst_59 = arith.constant 1.000000e+00 : f32
      %316 = vector.broadcast %cst_59 : f32 to vector<8x128xf32>
      %317 = arith.subf %316, %308 : vector<8x128xf32>
      %318 = arith.mulf %317, %315 : vector<8x128xf32>
      %319 = arith.mulf %308, %287 : vector<8x128xf32>
      %320 = arith.addf %318, %319 : vector<8x128xf32>
      %321 = arith.addi %3, %c7_i32 : i32
      %322 = vector.broadcast %321 : i32 to vector<8x1xi32>
      %323 = arith.cmpi sgt, %11, %322 : vector<8x1xi32>
      %324 = vector.shape_cast %323 : vector<8x1xi1> to vector<8x1xi1>
      %325 = vector.broadcast %324 : vector<8x1xi1> to vector<8x128xi1>
      %326 = arith.select %325, %320, %287 : vector<8x128xi1>, vector<8x128xf32>
      %c8_i32_60 = arith.constant 8 : i32
      %c0_61 = arith.constant 0 : index
      %c0_62 = arith.constant 0 : index
      %327 = vector.load %arg8[%c0_61, %c0_62] : memref<8x128xf32, #tpu.memory_space<vmem>>, vector<8x128xf32>
      tpu.vector_store %arg8[%c0_61, %c0_62], %326 {strides = array<i32>} : memref<8x128xf32, #tpu.memory_space<vmem>>, vector<8x128xf32>,
    } else {
    }
    %c0_i32_2 = arith.constant 0 : i32
    %8 = arith.cmpi eq, %arg1, %c0_i32_2 : i32
    %9 = arith.extui %8 : i1 to i32
    %c0_i32_3 = arith.constant 0 : i32
    %10 = arith.cmpi ne, %9, %c0_i32_3 : i32
    scf.if %10 {
      %c0_4 = arith.constant 0 : index
      %c0_5 = arith.constant 0 : index
      %11 = vector.load %arg8[%c0_4, %c0_5] : memref<8x128xf32, #tpu.memory_space<vmem>>, vector<8x128xf32>
      %c0_6 = arith.constant 0 : index
      %c0_7 = arith.constant 0 : index
      %12 = vector.load %arg7[%c0_6, %c0_7] : memref<8x128xf32, #tpu.memory_space<vmem>>, vector<8x128xf32>
      tpu.vector_store %arg7[%c0_6, %c0_7], %11 {strides = array<i32>} : memref<8x128xf32, #tpu.memory_space<vmem>>, vector<8x128xf32>,
    } else {
    }
    return
  }
  func.func @transform_0(%arg0: i32, %arg1: i32, %arg2: memref<1xi32, #tpu.memory_space<smem>>) -> (i32, i32, i32) {
    %c0_i32 = arith.constant 0 : i32
    %c0_i32_0 = arith.constant 0 : i32
    return %arg1, %arg0, %c0_i32 : i32, i32, i32
  }
  func.func @transform_1(%arg0: i32, %arg1: i32, %arg2: memref<1xi32, #tpu.memory_space<smem>>) -> (i32, i32) {
    %c0_i32 = arith.constant 0 : i32
    %c0_i32_0 = arith.constant 0 : i32
    return %arg0, %c0_i32 : i32, i32
  }
  func.func @transform_2(%arg0: i32, %arg1: i32, %arg2: memref<1xi32, #tpu.memory_space<smem>>) -> (i32, i32) {
    %c0_i32 = arith.constant 0 : i32
    %c0_i32_0 = arith.constant 0 : i32
    %c0_i32_1 = arith.constant 0 : i32
    return %c0_i32, %c0_i32_0 : i32, i32
  }
  func.func @transform_3(%arg0: i32, %arg1: i32, %arg2: memref<1xi32, #tpu.memory_space<smem>>) -> (i32, i32) {
    %c0_i32 = arith.constant 0 : i32
    %c0_i32_0 = arith.constant 0 : i32
    %c0_i32_1 = arith.constant 0 : i32
    return %c0_i32, %c0_i32_0 : i32, i32
  }
  func.func @transform_4(%arg0: i32, %arg1: i32, %arg2: memref<1xi32, #tpu.memory_space<smem>>) -> (i32, i32) {
    %c0_i32 = arith.constant 0 : i32
    %c0_i32_0 = arith.constant 0 : i32
    return %arg0, %c0_i32 : i32, i32
  }
}

</mosaic_0001>

<llo_original>
// kernel: encoder_forward.1
$region0: #{encoder_forward.1}
  #allocation0 [shape = 'u32[]', space=smem, size = 0x4, offset = 0x4, fixed_abs, tag = 'smem constant byte address 0x4 - core index']
  #allocation1 [shape = 'u32[144,128]{1,0:T(1,128)}', space=vmem, size = 0x12000, scoped, tag = 'internal scratch']
  #allocation2 [shape = 'f32[8,128]{1,0:T(8,128)}', space=vmem, size = 0x1000, scoped, tag = 'scratch operand']
  #allocation3 [shape = 's32[1]{0}', space=sflag, size = 0x4, scoped, tag = 'scoped memory for encoder_forward.1']
  #allocation4 [shape = 's32[1]{0:T(128)S(6)}', space=smem, size = 0x200, scoped, tag = 'prefetched SMEM operand 0']
  %s0 = inlined_call_operand.<no memory space> [shape: s32[1], index: 0, kind: input, shape index: {}]
  %s1 = inlined_call_operand.vmem [shape: f32[8,8,384], index: 1, kind: input, shape index: {}]
  %s2 = inlined_call_operand.vmem [shape: s32[8,1], index: 2, kind: input, shape index: {}]
  %s3 = inlined_call_operand.vmem [shape: bf16[128,384], index: 3, kind: input, shape index: {}]
  %s4 = inlined_call_operand.vmem [shape: f32[1,128], index: 4, kind: input, shape index: {}]
  %s5 = inlined_call_operand.vmem [shape: f32[8,128], index: 5, kind: output, shape index: {}]
  %s6 = sld [smem:[#allocation0]]
  $region38: #{encoder_forward.1} parent=0
    _
  %s8 = ssub.s32 1, %s6
  %s9 = scalar_select 0, %s8, %s6
  %10 = sst [smem:[#allocation4]] %s0
  // Predicated region
  $region2: #{encoder_forward.1} parent=0 // pred_check
    _
  $region3: #{encoder_forward.1} parent=0 // pred_check_branch
    %12 = sbr.rel (0) target = $region5
  $region4: #{encoder_forward.1} parent=0 // pred_region
    _
  $region5: #{encoder_forward.1} parent=0 // pred_fallthru
    _
  // Predicated region
  $region6: #{encoder_forward.1} parent=0 // pred_check
    _
  $region7: #{encoder_forward.1} parent=0 // pred_check_branch
    %14 = sbr.rel (0) target = $region9
  $region8: #{encoder_forward.1} parent=0 // pred_region
    _
  $region9: #{encoder_forward.1} parent=0 // pred_fallthru
    _
  // Predicated region
  $region10: #{encoder_forward.1} parent=0 // pred_check
    _
  $region11: #{encoder_forward.1} parent=0 // pred_check_branch
    %16 = sbr.rel (0) target = $region13
  $region12: #{encoder_forward.1} parent=0 // pred_region
    _
  $region13: #{encoder_forward.1} parent=0 // pred_fallthru
    _
  // Predicated region
  $region14: #{encoder_forward.1} parent=0 // pred_check
    _
  $region15: #{encoder_forward.1} parent=0 // pred_check_branch
    %18 = sbr.rel (0) target = $region17
  $region16: #{encoder_forward.1} parent=0 // pred_region
    _
  $region17: #{encoder_forward.1} parent=0 // pred_fallthru
    _
  %p20 = scmp.eq.s32.totalorder 0, 0
  // Predicated region
  $region18: #{encoder_forward.1} parent=0 // pred_check
    %p21 = pneg %p20
  $region19: #{encoder_forward.1} parent=0 // pred_check_branch
    %23 = sbr.rel (%p21) target = $region21
  $region20: #{encoder_forward.1} parent=0 // pred_region
    %24 = vst [vmem:[#allocation2] sm:$0xff] 0.0
  $region21: #{encoder_forward.1} parent=0 // pred_fallthru
    _
  %s25 = smul.u32 0, 8
  %s26 = sld [smem:[#allocation4]]
  %p27 = scmp.lt.s32.totalorder %s25, %s26
  // Predicated region
  $region22: #{encoder_forward.1} parent=0 // pred_check
    %p28 = pneg %p27
  $region23: #{encoder_forward.1} parent=0 // pred_check_branch
    %30 = sbr.rel (%p28) target = $region25
  $region24: #{encoder_forward.1} parent=0 // pred_region
    %v31 = vld [vmem:[%s2] sm:$0xff]
    %v32 = vld [vmem:[%s3] sm:$0xff]
    %v33 = vld [vmem:[%s3 + $0x8] sm:$0xf]
    %v34 = vld [vmem:[%s3 + $0xc] sm:$0xff]
    %v35 = vld [vmem:[%s3 + $0x14] sm:$0xf]
    %v36 = vld [vmem:[%s3 + $0x18] sm:$0xff]
    %v37 = vld [vmem:[%s3 + $0x20] sm:$0xf]
    %v38 = vld [vmem:[%s3 + $0x24] sm:$0xff]
    %v39 = vld [vmem:[%s3 + $0x2c] sm:$0xf]
    %v40 = vld [vmem:[%s3 + $0x30] sm:$0xff]
    %v41 = vld [vmem:[%s3 + $0x38] sm:$0xf]
    %v42 = vld [vmem:[%s3 + $0x3c] sm:$0xff]
    %v43 = vld [vmem:[%s3 + $0x44] sm:$0xf]
    %v44 = vld [vmem:[%s3 + $0x48] sm:$0xff]
    %v45 = vld [vmem:[%s3 + $0x50] sm:$0xf]
    %v46 = vld [vmem:[%s3 + $0x54] sm:$0xff]
    %v47 = vld [vmem:[%s3 + $0x5c] sm:$0xf]
    %v48 = vld [vmem:[%s3 + $0x60] sm:$0xff]
    %v49 = vld [vmem:[%s3 + $0x68] sm:$0xf]
    %v50 = vld [vmem:[%s3 + $0x6c] sm:$0xff]
    %v51 = vld [vmem:[%s3 + $0x74] sm:$0xf]
    %v52 = vld [vmem:[%s3 + $0x78] sm:$0xff]
    %v53 = vld [vmem:[%s3 + $0x80] sm:$0xf]
    %v54 = vld [vmem:[%s3 + $0x84] sm:$0xff]
    %v55 = vld [vmem:[%s3 + $0x8c] sm:$0xf]
    %v56 = vld [vmem:[%s3 + $0x90] sm:$0xff]
    %v57 = vld [vmem:[%s3 + $0x98] sm:$0xf]
    %v58 = vld [vmem:[%s3 + $0x9c] sm:$0xff]
    %v59 = vld [vmem:[%s3 + $0xa4] sm:$0xf]
    %v60 = vld [vmem:[%s3 + $0xa8] sm:$0xff]
    %v61 = vld [vmem:[%s3 + $0xb0] sm:$0xf]
    %v62 = vld [vmem:[%s3 + $0xb4] sm:$0xff]
    %v63 = vld [vmem:[%s3 + $0xbc] sm:$0xf]
    %v64 = vld [vmem:[%s4] sm:$0x1]
    %v65 = vld [vmem:[#allocation2] sm:$0xff]
    %v66 = vld [vmem:[%s1] sm:$0xff]
    %v67 = vld [vmem:[%s1 + $0x8] sm:$0xff]
    %v68 = vld [vmem:[%s1 + $0x10] sm:$0xff]
    %v69 = vpack.c.bf16 %v65, %v65
    %v102 = vunpack.c.l.b16 %v32
    %v103 = vunpack.c.h.b16 %v32
    %v104 = vunpack.c.l.b16 %v33
    %v105 = vunpack.c.l.b16 %v34
    %v106 = vunpack.c.h.b16 %v34
    %v107 = vunpack.c.l.b16 %v35
    %v108 = vunpack.c.l.b16 %v36
    %v109 = vunpack.c.h.b16 %v36
    %v110 = vunpack.c.l.b16 %v37
    %v111 = vunpack.c.l.b16 %v38
    %v112 = vunpack.c.h.b16 %v38
    %v113 = vunpack.c.l.b16 %v39
    %v114 = vunpack.c.l.b16 %v40
    %v115 = vunpack.c.h.b16 %v40
    %v116 = vunpack.c.l.b16 %v41
    %v117 = vunpack.c.l.b16 %v42
    %v118 = vunpack.c.h.b16 %v42
    %v119 = vunpack.c.l.b16 %v43
    %v120 = vunpack.c.l.b16 %v44
    %v121 = vunpack.c.h.b16 %v44
    %v122 = vunpack.c.l.b16 %v45
    %v123 = vunpack.c.l.b16 %v46
    %v124 = vunpack.c.h.b16 %v46
    %v125 = vunpack.c.l.b16 %v47
    %v126 = vunpack.c.l.b16 %v48
    %v127 = vunpack.c.h.b16 %v48
    %v128 = vunpack.c.l.b16 %v49
    %v129 = vunpack.c.l.b16 %v50
    %v130 = vunpack.c.h.b16 %v50
    %v131 = vunpack.c.l.b16 %v51
    %v132 = vunpack.c.l.b16 %v52
    %v133 = vunpack.c.h.b16 %v52
    %v134 = vunpack.c.l.b16 %v53
    %v135 = vunpack.c.l.b16 %v54
    %v136 = vunpack.c.h.b16 %v54
    %v137 = vunpack.c.l.b16 %v55
    %v138 = vunpack.c.l.b16 %v56
    %v139 = vunpack.c.h.b16 %v56
    %v140 = vunpack.c.l.b16 %v57
    %v141 = vunpack.c.l.b16 %v58
    %v142 = vunpack.c.h.b16 %v58
    %v143 = vunpack.c.l.b16 %v59
    %v144 = vunpack.c.l.b16 %v60
    %v145 = vunpack.c.h.b16 %v60
    %v146 = vunpack.c.l.b16 %v61
    %v147 = vunpack.c.l.b16 %v62
    %v148 = vunpack.c.h.b16 %v62
    %v149 = vunpack.c.l.b16 %v63
    %v150 = vpack.c.b16 %v105, %v102
    %v151 = vpack.c.b16 %v106, %v103
    %v152 = vpack.c.b16 %v107, %v104
    %v153 = vpack.c.b16 %v111, %v108
    %v154 = vpack.c.b16 %v112, %v109
    %v155 = vpack.c.b16 %v113, %v110
    %v156 = vpack.c.b16 %v117, %v114
    %v157 = vpack.c.b16 %v118, %v115
    %v158 = vpack.c.b16 %v119, %v116
    %v159 = vpack.c.b16 %v123, %v120
    %v160 = vpack.c.b16 %v124, %v121
    %v161 = vpack.c.b16 %v125, %v122
    %v162 = vpack.c.b16 %v129, %v126
    %v163 = vpack.c.b16 %v130, %v127
    %v164 = vpack.c.b16 %v131, %v128
    %v165 = vpack.c.b16 %v135, %v132
    %v166 = vpack.c.b16 %v136, %v133
    %v167 = vpack.c.b16 %v137, %v134
    %v168 = vpack.c.b16 %v141, %v138
    %v169 = vpack.c.b16 %v142, %v139
    %v170 = vpack.c.b16 %v143, %v140
    %v171 = vpack.c.b16 %v147, %v144
    %v172 = vpack.c.b16 %v148, %v145
    %v173 = vpack.c.b16 %v149, %v146
    %198 = vmatprep.subr.bf16.mxu0 %v151
    %199 = vmatpush1.bf16.msra.mxu0 %v150
    %200 = vmatprep.subr.bf16.mxu0 %v154
    %201 = vmatpush1.bf16.msra.mxu0 %v153
    %202 = vmatprep.subr.bf16.mxu0 %v157
    %203 = vmatpush1.bf16.msra.mxu0 %v156
    %204 = vmatprep.subr.bf16.mxu0 %v160
    %205 = vmatpush1.bf16.msra.mxu0 %v159
    %206 = vmatprep.subr.bf16.mxu0 %v163
    %207 = vmatpush1.bf16.msra.mxu0 %v162
    %208 = vmatprep.subr.bf16.mxu0 %v166
    %209 = vmatpush1.bf16.msra.mxu0 %v165
    %210 = vmatprep.subr.bf16.mxu0 %v169
    %211 = vmatpush1.bf16.msra.mxu0 %v168
    %212 = vmatprep.subr.bf16.mxu0 %v172
    %213 = vmatpush1.bf16.msra.mxu0 %v171
    %214 = vmatprep.subr.bf16.mxu0 0
    %215 = vmatpush1.bf16.msra.mxu0 0
    %216 = vmatprep.subr.bf16.mxu0 0
    %217 = vmatpush1.bf16.msra.mxu0 0
    %218 = vmatprep.subr.bf16.mxu0 0
    %219 = vmatpush1.bf16.msra.mxu0 0
    %220 = vmatprep.subr.bf16.mxu0 0
    %221 = vmatpush1.bf16.msra.mxu0 0
    %222 = vmatprep.subr.bf16.mxu0 0
    %223 = vmatpush1.bf16.msra.mxu0 0
    %224 = vmatprep.subr.bf16.mxu0 0
    %225 = vmatpush1.bf16.msra.mxu0 0
    %226 = vmatprep.subr.bf16.mxu0 0
    %227 = vmatpush1.bf16.msra.mxu0 0
    %228 = vmatprep.subr.bf16.mxu0 0
    %229 = vmatpush1.bf16.msra.mxu0 0
    %230 = vmatprep.mubr.bf16.mxu0 0
    %231 = vmatmul.mubr.bf16.gmra.mrb[0].mxu0 %v69
    %v232 = vpop.f32.mrb[0].mxu0
    %v233 = vadd.f32 0.0, %v232
    %v234 = vpop.f32.mrb[0].mxu0
    %v235 = vadd.f32 0.0, %v234
    %v236 = vpop.f32.mrb[0].mxu0
    %v237 = vpop.f32.mrb[0].mxu0
    %238 = vdwg.mxu0
    %239 = vmatprep.subr.bf16.mxu0 0
    %240 = vmatpush1.bf16.msra.mxu0 %v152
    %241 = vmatprep.subr.bf16.mxu0 0
    %242 = vmatpush1.bf16.msra.mxu0 %v155
    %243 = vmatprep.subr.bf16.mxu0 0
    %244 = vmatpush1.bf16.msra.mxu0 %v158
    %245 = vmatprep.subr.bf16.mxu0 0
    %246 = vmatpush1.bf16.msra.mxu0 %v161
    %247 = vmatprep.subr.bf16.mxu0 0
    %248 = vmatpush1.bf16.msra.mxu0 %v164
    %249 = vmatprep.subr.bf16.mxu0 0
    %250 = vmatpush1.bf16.msra.mxu0 %v167
    %251 = vmatprep.subr.bf16.mxu0 0
    %252 = vmatpush1.bf16.msra.mxu0 %v170
    %253 = vmatprep.subr.bf16.mxu0 0
    %254 = vmatpush1.bf16.msra.mxu0 %v173
    %255 = vmatprep.subr.bf16.mxu0 0
    %256 = vmatpush1.bf16.msra.mxu0 0
    %257 = vmatprep.subr.bf16.mxu0 0
    %258 = vmatpush1.bf16.msra.mxu0 0
    %259 = vmatprep.subr.bf16.mxu0 0
    %260 = vmatpush1.bf16.msra.mxu0 0
    %261 = vmatprep.subr.bf16.mxu0 0
    %262 = vmatpush1.bf16.msra.mxu0 0
    %263 = vmatprep.subr.bf16.mxu0 0
    %264 = vmatpush1.bf16.msra.mxu0 0
    %265 = vmatprep.subr.bf16.mxu0 0
    %266 = vmatpush1.bf16.msra.mxu0 0
    %267 = vmatprep.subr.bf16.mxu0 0
    %268 = vmatpush1.bf16.msra.mxu0 0
    %269 = vmatprep.subr.bf16.mxu0 0
    %270 = vmatpush1.bf16.msra.mxu0 0
    %271 = vmatprep.mubr.bf16.mxu0 0
    %272 = vmatmul.mubr.bf16.gmra.mrb[0].mxu0 %v69
    %v273 = vpop.f32.mrb[0].mxu0
    %v274 = vadd.f32 0.0, %v273
    %v275 = vpop.f32.mrb[0].mxu0
    %v276 = vpop.f32.mrb[0].mxu0
    %v277 = vpop.f32.mrb[0].mxu0
    %278 = vdwg.mxu0
    %v279 = vadd.f32 %v66, %v233
    %v280 = vxor.u32 %v279, 2147483648
    %v281 = vmul.f32 %v280, 1.442695
    %v282 = vpow.pop %v281
    %v283 = vadd.f32 %v282, 1.0
    %v284 = vrcp.pop %v283
    %v285 = vmul.f32 1.0, %v284
    %v286 = vadd.f32 %v67, %v235
    %v287 = vxor.u32 %v286, 2147483648
    %v288 = vmul.f32 %v287, 1.442695
    %v289 = vpow.pop %v288
    %v290 = vadd.f32 %v289, 1.0
    %v291 = vrcp.pop %v290
    %v292 = vmul.f32 1.0, %v291
    %v294 = vlaneseq
    %v295 = vshrl.u32 %v294, 7
    %v296 = vsub.s32 0, %v295
    %v297 = vrot.slane %v64, %v296
    %v299 = vadd.f32 %v274, %v297
    %v300 = vmul.f32 %v285, %v299
    %v301 = vadd.f32 %v68, %v300
    %v302 = vtanh.pop %v301
    %v303 = vsub.f32 1.0, %v292
    %v304 = vmul.f32 %v303, %v302
    %v305 = vmul.f32 %v292, %v65
    %v306 = vadd.f32 %v304, %v305
    %v307 = vstv %s25
    %vm308 = vcmp.gt.s32.totalorder %v31, %v307
    %v309 = vsel %vm308, 1, 0
    %310 = vset.pattern.permute.xlu0 0
    %311 = vperm.xlu0 %310, %v309
    %v312 = vpop.permute.xlu0 %311
    %vm313 = vcmp.eq.s32.totalorder %v312, 1
    %v314 = vsel %vm313, %v306, %v65
    %s315 = scalar_lea.vmem %s1, 24
    %v316 = vld [vmem:[%s315] sm:$0xff]
    %v317 = vld [vmem:[%s315 + $0x8] sm:$0xff]
    %v318 = vld [vmem:[%s315 + $0x10] sm:$0xff]
    %v319 = vpack.c.bf16 %v314, %v314
    %320 = vmatprep.subr.bf16.mxu0 %v151
    %321 = vmatpush1.bf16.msra.mxu0 %v150
    %322 = vmatprep.subr.bf16.mxu0 %v154
    %323 = vmatpush1.bf16.msra.mxu0 %v153
    %324 = vmatprep.subr.bf16.mxu0 %v157
    %325 = vmatpush1.bf16.msra.mxu0 %v156
    %326 = vmatprep.subr.bf16.mxu0 %v160
    %327 = vmatpush1.bf16.msra.mxu0 %v159
    %328 = vmatprep.subr.bf16.mxu0 %v163
    %329 = vmatpush1.bf16.msra.mxu0 %v162
    %330 = vmatprep.subr.bf16.mxu0 %v166
    %331 = vmatpush1.bf16.msra.mxu0 %v165
    %332 = vmatprep.subr.bf16.mxu0 %v169
    %333 = vmatpush1.bf16.msra.mxu0 %v168
    %334 = vmatprep.subr.bf16.mxu0 %v172
    %335 = vmatpush1.bf16.msra.mxu0 %v171
    %336 = vmatprep.subr.bf16.mxu0 0
    %337 = vmatpush1.bf16.msra.mxu0 0
    %338 = vmatprep.subr.bf16.mxu0 0
    %339 = vmatpush1.bf16.msra.mxu0 0
    %340 = vmatprep.subr.bf16.mxu0 0
    %341 = vmatpush1.bf16.msra.mxu0 0
    %342 = vmatprep.subr.bf16.mxu0 0
    %343 = vmatpush1.bf16.msra.mxu0 0
    %344 = vmatprep.subr.bf16.mxu0 0
    %345 = vmatpush1.bf16.msra.mxu0 0
    %346 = vmatprep.subr.bf16.mxu0 0
    %347 = vmatpush1.bf16.msra.mxu0 0
    %348 = vmatprep.subr.bf16.mxu0 0
    %349 = vmatpush1.bf16.msra.mxu0 0
    %350 = vmatprep.subr.bf16.mxu0 0
    %351 = vmatpush1.bf16.msra.mxu0 0
    %352 = vmatprep.mubr.bf16.mxu0 0
    %353 = vmatmul.mubr.bf16.gmra.mrb[0].mxu0 %v319
    %v354 = vpop.f32.mrb[0].mxu0
    %v355 = vadd.f32 0.0, %v354
    %v356 = vpop.f32.mrb[0].mxu0
    %v357 = vadd.f32 0.0, %v356
    %v358 = vpop.f32.mrb[0].mxu0
    %v359 = vpop.f32.mrb[0].mxu0
    %360 = vdwg.mxu0
    %361 = vmatprep.subr.bf16.mxu0 0
    %362 = vmatpush1.bf16.msra.mxu0 %v152
    %363 = vmatprep.subr.bf16.mxu0 0
    %364 = vmatpush1.bf16.msra.mxu0 %v155
    %365 = vmatprep.subr.bf16.mxu0 0
    %366 = vmatpush1.bf16.msra.mxu0 %v158
    %367 = vmatprep.subr.bf16.mxu0 0
    %368 = vmatpush1.bf16.msra.mxu0 %v161
    %369 = vmatprep.subr.bf16.mxu0 0
    %370 = vmatpush1.bf16.msra.mxu0 %v164
    %371 = vmatprep.subr.bf16.mxu0 0
    %372 = vmatpush1.bf16.msra.mxu0 %v167
    %373 = vmatprep.subr.bf16.mxu0 0
    %374 = vmatpush1.bf16.msra.mxu0 %v170
    %375 = vmatprep.subr.bf16.mxu0 0
    %376 = vmatpush1.bf16.msra.mxu0 %v173
    %377 = vmatprep.subr.bf16.mxu0 0
    %378 = vmatpush1.bf16.msra.mxu0 0
    %379 = vmatprep.subr.bf16.mxu0 0
    %380 = vmatpush1.bf16.msra.mxu0 0
    %381 = vmatprep.subr.bf16.mxu0 0
    %382 = vmatpush1.bf16.msra.mxu0 0
    %383 = vmatprep.subr.bf16.mxu0 0
    %384 = vmatpush1.bf16.msra.mxu0 0
    %385 = vmatprep.subr.bf16.mxu0 0
    %386 = vmatpush1.bf16.msra.mxu0 0
    %387 = vmatprep.subr.bf16.mxu0 0
    %388 = vmatpush1.bf16.msra.mxu0 0
    %389 = vmatprep.subr.bf16.mxu0 0
    %390 = vmatpush1.bf16.msra.mxu0 0
    %391 = vmatprep.subr.bf16.mxu0 0
    %392 = vmatpush1.bf16.msra.mxu0 0
    %393 = vmatprep.mubr.bf16.mxu0 0
    %394 = vmatmul.mubr.bf16.gmra.mrb[0].mxu0 %v319
    %v395 = vpop.f32.mrb[0].mxu0
    %v396 = vadd.f32 0.0, %v395
    %v397 = vpop.f32.mrb[0].mxu0
    %v398 = vpop.f32.mrb[0].mxu0
    %v399 = vpop.f32.mrb[0].mxu0
    %400 = vdwg.mxu0
    %v401 = vadd.f32 %v316, %v355
    %v402 = vxor.u32 %v401, 2147483648
    %v403 = vmul.f32 %v402, 1.442695
    %v404 = vpow.pop %v403
    %v405 = vadd.f32 %v404, 1.0
    %v406 = vrcp.pop %v405
    %v407 = vmul.f32 1.0, %v406
    %v408 = vadd.f32 %v317, %v357
    %v409 = vxor.u32 %v408, 2147483648
    %v410 = vmul.f32 %v409, 1.442695
    %v411 = vpow.pop %v410
    %v412 = vadd.f32 %v411, 1.0
    %v413 = vrcp.pop %v412
    %v414 = vmul.f32 1.0, %v413
    %v415 = vadd.f32 %v396, %v297
    %v416 = vmul.f32 %v407, %v415
    %v417 = vadd.f32 %v318, %v416
    %v418 = vtanh.pop %v417
    %v419 = vsub.f32 1.0, %v414
    %v420 = vmul.f32 %v419, %v418
    %v421 = vmul.f32 %v414, %v314
    %v422 = vadd.f32 %v420, %v421
    %s423 = sadd.s32 %s25, 1
    %v424 = vstv %s423
    %vm425 = vcmp.gt.s32.totalorder %v31, %v424
    %v426 = vsel %vm425, 1, 0
    %427 = vset.pattern.permute.xlu0 0
    %428 = vperm.xlu0 %427, %v426
    %v429 = vpop.permute.xlu0 %428
    %vm430 = vcmp.eq.s32.totalorder %v429, 1
    %v431 = vsel %vm430, %v422, %v314
    %s432 = scalar_lea.vmem %s1, 48
    %v433 = vld [vmem:[%s432] sm:$0xff]
    %v434 = vld [vmem:[%s432 + $0x8] sm:$0xff]
    %v435 = vld [vmem:[%s432 + $0x10] sm:$0xff]
    %v436 = vpack.c.bf16 %v431, %v431
    %437 = vmatprep.subr.bf16.mxu0 %v151
    %438 = vmatpush1.bf16.msra.mxu0 %v150
    %439 = vmatprep.subr.bf16.mxu0 %v154
    %440 = vmatpush1.bf16.msra.mxu0 %v153
    %441 = vmatprep.subr.bf16.mxu0 %v157
    %442 = vmatpush1.bf16.msra.mxu0 %v156
    %443 = vmatprep.subr.bf16.mxu0 %v160
    %444 = vmatpush1.bf16.msra.mxu0 %v159
    %445 = vmatprep.subr.bf16.mxu0 %v163
    %446 = vmatpush1.bf16.msra.mxu0 %v162
    %447 = vmatprep.subr.bf16.mxu0 %v166
    %448 = vmatpush1.bf16.msra.mxu0 %v165
    %449 = vmatprep.subr.bf16.mxu0 %v169
    %450 = vmatpush1.bf16.msra.mxu0 %v168
    %451 = vmatprep.subr.bf16.mxu0 %v172
    %452 = vmatpush1.bf16.msra.mxu0 %v171
    %453 = vmatprep.subr.bf16.mxu0 0
    %454 = vmatpush1.bf16.msra.mxu0 0
    %455 = vmatprep.subr.bf16.mxu0 0
    %456 = vmatpush1.bf16.msra.mxu0 0
    %457 = vmatprep.subr.bf16.mxu0 0
    %458 = vmatpush1.bf16.msra.mxu0 0
    %459 = vmatprep.subr.bf16.mxu0 0
    %460 = vmatpush1.bf16.msra.mxu0 0
    %461 = vmatprep.subr.bf16.mxu0 0
    %462 = vmatpush1.bf16.msra.mxu0 0
    %463 = vmatprep.subr.bf16.mxu0 0
    %464 = vmatpush1.bf16.msra.mxu0 0
    %465 = vmatprep.subr.bf16.mxu0 0
    %466 = vmatpush1.bf16.msra.mxu0 0
    %467 = vmatprep.subr.bf16.mxu0 0
    %468 = vmatpush1.bf16.msra.mxu0 0
    %469 = vmatprep.mubr.bf16.mxu0 0
    %470 = vmatmul.mubr.bf16.gmra.mrb[0].mxu0 %v436
    %v471 = vpop.f32.mrb[0].mxu0
    %v472 = vadd.f32 0.0, %v471
    %v473 = vpop.f32.mrb[0].mxu0
    %v474 = vadd.f32 0.0, %v473
    %v475 = vpop.f32.mrb[0].mxu0
    %v476 = vpop.f32.mrb[0].mxu0
    %477 = vdwg.mxu0
    %478 = vmatprep.subr.bf16.mxu0 0
    %479 = vmatpush1.bf16.msra.mxu0 %v152
    %480 = vmatprep.subr.bf16.mxu0 0
    %481 = vmatpush1.bf16.msra.mxu0 %v155
    %482 = vmatprep.subr.bf16.mxu0 0
    %483 = vmatpush1.bf16.msra.mxu0 %v158
    %484 = vmatprep.subr.bf16.mxu0 0
    %485 = vmatpush1.bf16.msra.mxu0 %v161
    %486 = vmatprep.subr.bf16.mxu0 0
    %487 = vmatpush1.bf16.msra.mxu0 %v164
    %488 = vmatprep.subr.bf16.mxu0 0
    %489 = vmatpush1.bf16.msra.mxu0 %v167
    %490 = vmatprep.subr.bf16.mxu0 0
    %491 = vmatpush1.bf16.msra.mxu0 %v170
    %492 = vmatprep.subr.bf16.mxu0 0
    %493 = vmatpush1.bf16.msra.mxu0 %v173
    %494 = vmatprep.subr.bf16.mxu0 0
    %495 = vmatpush1.bf16.msra.mxu0 0
    %496 = vmatprep.subr.bf16.mxu0 0
    %497 = vmatpush1.bf16.msra.mxu0 0
    %498 = vmatprep.subr.bf16.mxu0 0
    %499 = vmatpush1.bf16.msra.mxu0 0
    %500 = vmatprep.subr.bf16.mxu0 0
    %501 = vmatpush1.bf16.msra.mxu0 0
    %502 = vmatprep.subr.bf16.mxu0 0
    %503 = vmatpush1.bf16.msra.mxu0 0
    %504 = vmatprep.subr.bf16.mxu0 0
    %505 = vmatpush1.bf16.msra.mxu0 0
    %506 = vmatprep.subr.bf16.mxu0 0
    %507 = vmatpush1.bf16.msra.mxu0 0
    %508 = vmatprep.subr.bf16.mxu0 0
    %509 = vmatpush1.bf16.msra.mxu0 0
    %510 = vmatprep.mubr.bf16.mxu0 0
    %511 = vmatmul.mubr.bf16.gmra.mrb[0].mxu0 %v436
    %v512 = vpop.f32.mrb[0].mxu0
    %v513 = vadd.f32 0.0, %v512
    %v514 = vpop.f32.mrb[0].mxu0
    %v515 = vpop.f32.mrb[0].mxu0
    %v516 = vpop.f32.mrb[0].mxu0
    %517 = vdwg.mxu0
    %v518 = vadd.f32 %v433, %v472
    %v519 = vxor.u32 %v518, 2147483648
    %v520 = vmul.f32 %v519, 1.442695
    %v521 = vpow.pop %v520
    %v522 = vadd.f32 %v521, 1.0
    %v523 = vrcp.pop %v522
    %v524 = vmul.f32 1.0, %v523
    %v525 = vadd.f32 %v434, %v474
    %v526 = vxor.u32 %v525, 2147483648
    %v527 = vmul.f32 %v526, 1.442695
    %v528 = vpow.pop %v527
    %v529 = vadd.f32 %v528, 1.0
    %v530 = vrcp.pop %v529
    %v531 = vmul.f32 1.0, %v530
    %v532 = vadd.f32 %v513, %v297
    %v533 = vmul.f32 %v524, %v532
    %v534 = vadd.f32 %v435, %v533
    %v535 = vtanh.pop %v534
    %v536 = vsub.f32 1.0, %v531
    %v537 = vmul.f32 %v536, %v535
    %v538 = vmul.f32 %v531, %v431
    %v539 = vadd.f32 %v537, %v538
    %s540 = sadd.s32 %s25, 2
    %v541 = vstv %s540
    %vm542 = vcmp.gt.s32.totalorder %v31, %v541
    %v543 = vsel %vm542, 1, 0
    %544 = vset.pattern.permute.xlu0 0
    %545 = vperm.xlu0 %544, %v543
    %v546 = vpop.permute.xlu0 %545
    %vm547 = vcmp.eq.s32.totalorder %v546, 1
    %v548 = vsel %vm547, %v539, %v431
    %s549 = scalar_lea.vmem %s1, 72
    %v550 = vld [vmem:[%s549] sm:$0xff]
    %v551 = vld [vmem:[%s549 + $0x8] sm:$0xff]
    %v552 = vld [vmem:[%s549 + $0x10] sm:$0xff]
    %v553 = vpack.c.bf16 %v548, %v548
    %554 = vmatprep.subr.bf16.mxu0 %v151
    %555 = vmatpush1.bf16.msra.mxu0 %v150
    %556 = vmatprep.subr.bf16.mxu0 %v154
    %557 = vmatpush1.bf16.msra.mxu0 %v153
    %558 = vmatprep.subr.bf16.mxu0 %v157
    %559 = vmatpush1.bf16.msra.mxu0 %v156
    %560 = vmatprep.subr.bf16.mxu0 %v160
    %561 = vmatpush1.bf16.msra.mxu0 %v159
    %562 = vmatprep.subr.bf16.mxu0 %v163
    %563 = vmatpush1.bf16.msra.mxu0 %v162
    %564 = vmatprep.subr.bf16.mxu0 %v166
    %565 = vmatpush1.bf16.msra.mxu0 %v165
    %566 = vmatprep.subr.bf16.mxu0 %v169
    %567 = vmatpush1.bf16.msra.mxu0 %v168
    %568 = vmatprep.subr.bf16.mxu0 %v172
    %569 = vmatpush1.bf16.msra.mxu0 %v171
    %570 = vmatprep.subr.bf16.mxu0 0
    %571 = vmatpush1.bf16.msra.mxu0 0
    %572 = vmatprep.subr.bf16.mxu0 0
    %573 = vmatpush1.bf16.msra.mxu0 0
    %574 = vmatprep.subr.bf16.mxu0 0
    %575 = vmatpush1.bf16.msra.mxu0 0
    %576 = vmatprep.subr.bf16.mxu0 0
    %577 = vmatpush1.bf16.msra.mxu0 0
    %578 = vmatprep.subr.bf16.mxu0 0
    %579 = vmatpush1.bf16.msra.mxu0 0
    %580 = vmatprep.subr.bf16.mxu0 0
    %581 = vmatpush1.bf16.msra.mxu0 0
    %582 = vmatprep.subr.bf16.mxu0 0
    %583 = vmatpush1.bf16.msra.mxu0 0
    %584 = vmatprep.subr.bf16.mxu0 0
    %585 = vmatpush1.bf16.msra.mxu0 0
    %586 = vmatprep.mubr.bf16.mxu0 0
    %587 = vmatmul.mubr.bf16.gmra.mrb[0].mxu0 %v553
    %v588 = vpop.f32.mrb[0].mxu0
    %v589 = vadd.f32 0.0, %v588
    %v590 = vpop.f32.mrb[0].mxu0
    %v591 = vadd.f32 0.0, %v590
    %v592 = vpop.f32.mrb[0].mxu0
    %v593 = vpop.f32.mrb[0].mxu0
    %594 = vdwg.mxu0
    %595 = vmatprep.subr.bf16.mxu0 0
    %596 = vmatpush1.bf16.msra.mxu0 %v152
    %597 = vmatprep.subr.bf16.mxu0 0
    %598 = vmatpush1.bf16.msra.mxu0 %v155
    %599 = vmatprep.subr.bf16.mxu0 0
    %600 = vmatpush1.bf16.msra.mxu0 %v158
    %601 = vmatprep.subr.bf16.mxu0 0
    %602 = vmatpush1.bf16.msra.mxu0 %v161
    %603 = vmatprep.subr.bf16.mxu0 0
    %604 = vmatpush1.bf16.msra.mxu0 %v164
    %605 = vmatprep.subr.bf16.mxu0 0
    %606 = vmatpush1.bf16.msra.mxu0 %v167
    %607 = vmatprep.subr.bf16.mxu0 0
    %608 = vmatpush1.bf16.msra.mxu0 %v170
    %609 = vmatprep.subr.bf16.mxu0 0
    %610 = vmatpush1.bf16.msra.mxu0 %v173
    %611 = vmatprep.subr.bf16.mxu0 0
    %612 = vmatpush1.bf16.msra.mxu0 0
    %613 = vmatprep.subr.bf16.mxu0 0
    %614 = vmatpush1.bf16.msra.mxu0 0
    %615 = vmatprep.subr.bf16.mxu0 0
    %616 = vmatpush1.bf16.msra.mxu0 0
    %617 = vmatprep.subr.bf16.mxu0 0
    %618 = vmatpush1.bf16.msra.mxu0 0
    %619 = vmatprep.subr.bf16.mxu0 0
    %620 = vmatpush1.bf16.msra.mxu0 0
    %621 = vmatprep.subr.bf16.mxu0 0
    %622 = vmatpush1.bf16.msra.mxu0 0
    %623 = vmatprep.subr.bf16.mxu0 0
    %624 = vmatpush1.bf16.msra.mxu0 0
    %625 = vmatprep.subr.bf16.mxu0 0
    %626 = vmatpush1.bf16.msra.mxu0 0
    %627 = vmatprep.mubr.bf16.mxu0 0
    %628 = vmatmul.mubr.bf16.gmra.mrb[0].mxu0 %v553
    %v629 = vpop.f32.mrb[0].mxu0
    %v630 = vadd.f32 0.0, %v629
    %v631 = vpop.f32.mrb[0].mxu0
    %v632 = vpop.f32.mrb[0].mxu0
    %v633 = vpop.f32.mrb[0].mxu0
    %634 = vdwg.mxu0
    %v635 = vadd.f32 %v550, %v589
    %v636 = vxor.u32 %v635, 2147483648
    %v637 = vmul.f32 %v636, 1.442695
    %v638 = vpow.pop %v637
    %v639 = vadd.f32 %v638, 1.0
    %v640 = vrcp.pop %v639
    %v641 = vmul.f32 1.0, %v640
    %v642 = vadd.f32 %v551, %v591
    %v643 = vxor.u32 %v642, 2147483648
    %v644 = vmul.f32 %v643, 1.442695
    %v645 = vpow.pop %v644
    %v646 = vadd.f32 %v645, 1.0
    %v647 = vrcp.pop %v646
    %v648 = vmul.f32 1.0, %v647
    %v649 = vadd.f32 %v630, %v297
    %v650 = vmul.f32 %v641, %v649
    %v651 = vadd.f32 %v552, %v650
    %v652 = vtanh.pop %v651
    %v653 = vsub.f32 1.0, %v648
    %v654 = vmul.f32 %v653, %v652
    %v655 = vmul.f32 %v648, %v548
    %v656 = vadd.f32 %v654, %v655
    %s657 = sadd.s32 %s25, 3
    %v658 = vstv %s657
    %vm659 = vcmp.gt.s32.totalorder %v31, %v658
    %v660 = vsel %vm659, 1, 0
    %661 = vset.pattern.permute.xlu0 0
    %662 = vperm.xlu0 %661, %v660
    %v663 = vpop.permute.xlu0 %662
    %vm664 = vcmp.eq.s32.totalorder %v663, 1
    %v665 = vsel %vm664, %v656, %v548
    %s666 = scalar_lea.vmem %s1, 96
    %v667 = vld [vmem:[%s666] sm:$0xff]
    %v668 = vld [vmem:[%s666 + $0x8] sm:$0xff]
    %v669 = vld [vmem:[%s666 + $0x10] sm:$0xff]
    %v670 = vpack.c.bf16 %v665, %v665
    %671 = vmatprep.subr.bf16.mxu0 %v151
    %672 = vmatpush1.bf16.msra.mxu0 %v150
    %673 = vmatprep.subr.bf16.mxu0 %v154
    %674 = vmatpush1.bf16.msra.mxu0 %v153
    %675 = vmatprep.subr.bf16.mxu0 %v157
    %676 = vmatpush1.bf16.msra.mxu0 %v156
    %677 = vmatprep.subr.bf16.mxu0 %v160
    %678 = vmatpush1.bf16.msra.mxu0 %v159
    %679 = vmatprep.subr.bf16.mxu0 %v163
    %680 = vmatpush1.bf16.msra.mxu0 %v162
    %681 = vmatprep.subr.bf16.mxu0 %v166
    %682 = vmatpush1.bf16.msra.mxu0 %v165
    %683 = vmatprep.subr.bf16.mxu0 %v169
    %684 = vmatpush1.bf16.msra.mxu0 %v168
    %685 = vmatprep.subr.bf16.mxu0 %v172
    %686 = vmatpush1.bf16.msra.mxu0 %v171
    %687 = vmatprep.subr.bf16.mxu0 0
    %688 = vmatpush1.bf16.msra.mxu0 0
    %689 = vmatprep.subr.bf16.mxu0 0
    %690 = vmatpush1.bf16.msra.mxu0 0
    %691 = vmatprep.subr.bf16.mxu0 0
    %692 = vmatpush1.bf16.msra.mxu0 0
    %693 = vmatprep.subr.bf16.mxu0 0
    %694 = vmatpush1.bf16.msra.mxu0 0
    %695 = vmatprep.subr.bf16.mxu0 0
    %696 = vmatpush1.bf16.msra.mxu0 0
    %697 = vmatprep.subr.bf16.mxu0 0
    %698 = vmatpush1.bf16.msra.mxu0 0
    %699 = vmatprep.subr.bf16.mxu0 0
    %700 = vmatpush1.bf16.msra.mxu0 0
    %701 = vmatprep.subr.bf16.mxu0 0
    %702 = vmatpush1.bf16.msra.mxu0 0
    %703 = vmatprep.mubr.bf16.mxu0 0
    %704 = vmatmul.mubr.bf16.gmra.mrb[0].mxu0 %v670
    %v705 = vpop.f32.mrb[0].mxu0
    %v706 = vadd.f32 0.0, %v705
    %v707 = vpop.f32.mrb[0].mxu0
    %v708 = vadd.f32 0.0, %v707
    %v709 = vpop.f32.mrb[0].mxu0
    %v710 = vpop.f32.mrb[0].mxu0
    %711 = vdwg.mxu0
    %712 = vmatprep.subr.bf16.mxu0 0
    %713 = vmatpush1.bf16.msra.mxu0 %v152
    %714 = vmatprep.subr.bf16.mxu0 0
    %715 = vmatpush1.bf16.msra.mxu0 %v155
    %716 = vmatprep.subr.bf16.mxu0 0
    %717 = vmatpush1.bf16.msra.mxu0 %v158
    %718 = vmatprep.subr.bf16.mxu0 0
    %719 = vmatpush1.bf16.msra.mxu0 %v161
    %720 = vmatprep.subr.bf16.mxu0 0
    %721 = vmatpush1.bf16.msra.mxu0 %v164
    %722 = vmatprep.subr.bf16.mxu0 0
    %723 = vmatpush1.bf16.msra.mxu0 %v167
    %724 = vmatprep.subr.bf16.mxu0 0
    %725 = vmatpush1.bf16.msra.mxu0 %v170
    %726 = vmatprep.subr.bf16.mxu0 0
    %727 = vmatpush1.bf16.msra.mxu0 %v173
    %728 = vmatprep.subr.bf16.mxu0 0
    %729 = vmatpush1.bf16.msra.mxu0 0
    %730 = vmatprep.subr.bf16.mxu0 0
    %731 = vmatpush1.bf16.msra.mxu0 0
    %732 = vmatprep.subr.bf16.mxu0 0
    %733 = vmatpush1.bf16.msra.mxu0 0
    %734 = vmatprep.subr.bf16.mxu0 0
    %735 = vmatpush1.bf16.msra.mxu0 0
    %736 = vmatprep.subr.bf16.mxu0 0
    %737 = vmatpush1.bf16.msra.mxu0 0
    %738 = vmatprep.subr.bf16.mxu0 0
    %739 = vmatpush1.bf16.msra.mxu0 0
    %740 = vmatprep.subr.bf16.mxu0 0
    %741 = vmatpush1.bf16.msra.mxu0 0
    %742 = vmatprep.subr.bf16.mxu0 0
    %743 = vmatpush1.bf16.msra.mxu0 0
    %744 = vmatprep.mubr.bf16.mxu0 0
    %745 = vmatmul.mubr.bf16.gmra.mrb[0].mxu0 %v670
    %v746 = vpop.f32.mrb[0].mxu0
    %v747 = vadd.f32 0.0, %v746
    %v748 = vpop.f32.mrb[0].mxu0
    %v749 = vpop.f32.mrb[0].mxu0
    %v750 = vpop.f32.mrb[0].mxu0
    %751 = vdwg.mxu0
    %v752 = vadd.f32 %v667, %v706
    %v753 = vxor.u32 %v752, 2147483648
    %v754 = vmul.f32 %v753, 1.442695
    %v755 = vpow.pop %v754
    %v756 = vadd.f32 %v755, 1.0
    %v757 = vrcp.pop %v756
    %v758 = vmul.f32 1.0, %v757
    %v759 = vadd.f32 %v668, %v708
    %v760 = vxor.u32 %v759, 2147483648
    %v761 = vmul.f32 %v760, 1.442695
    %v762 = vpow.pop %v761
    %v763 = vadd.f32 %v762, 1.0
    %v764 = vrcp.pop %v763
    %v765 = vmul.f32 1.0, %v764
    %v766 = vadd.f32 %v747, %v297
    %v767 = vmul.f32 %v758, %v766
    %v768 = vadd.f32 %v669, %v767
    %v769 = vtanh.pop %v768
    %v770 = vsub.f32 1.0, %v765
    %v771 = vmul.f32 %v770, %v769
    %v772 = vmul.f32 %v765, %v665
    %v773 = vadd.f32 %v771, %v772
    %s774 = sadd.s32 %s25, 4
    %v775 = vstv %s774
    %vm776 = vcmp.gt.s32.totalorder %v31, %v775
    %v777 = vsel %vm776, 1, 0
    %778 = vset.pattern.permute.xlu0 0
    %779 = vperm.xlu0 %778, %v777
    %v780 = vpop.permute.xlu0 %779
    %vm781 = vcmp.eq.s32.totalorder %v780, 1
    %v782 = vsel %vm781, %v773, %v665
    %s783 = scalar_lea.vmem %s1, 120
    %v784 = vld [vmem:[%s783] sm:$0xff]
    %v785 = vld [vmem:[%s783 + $0x8] sm:$0xff]
    %v786 = vld [vmem:[%s783 + $0x10] sm:$0xff]
    %v787 = vpack.c.bf16 %v782, %v782
    %788 = vmatprep.subr.bf16.mxu0 %v151
    %789 = vmatpush1.bf16.msra.mxu0 %v150
    %790 = vmatprep.subr.bf16.mxu0 %v154
    %791 = vmatpush1.bf16.msra.mxu0 %v153
    %792 = vmatprep.subr.bf16.mxu0 %v157
    %793 = vmatpush1.bf16.msra.mxu0 %v156
    %794 = vmatprep.subr.bf16.mxu0 %v160
    %795 = vmatpush1.bf16.msra.mxu0 %v159
    %796 = vmatprep.subr.bf16.mxu0 %v163
    %797 = vmatpush1.bf16.msra.mxu0 %v162
    %798 = vmatprep.subr.bf16.mxu0 %v166
    %799 = vmatpush1.bf16.msra.mxu0 %v165
    %800 = vmatprep.subr.bf16.mxu0 %v169
    %801 = vmatpush1.bf16.msra.mxu0 %v168
    %802 = vmatprep.subr.bf16.mxu0 %v172
    %803 = vmatpush1.bf16.msra.mxu0 %v171
    %804 = vmatprep.subr.bf16.mxu0 0
    %805 = vmatpush1.bf16.msra.mxu0 0
    %806 = vmatprep.subr.bf16.mxu0 0
    %807 = vmatpush1.bf16.msra.mxu0 0
    %808 = vmatprep.subr.bf16.mxu0 0
    %809 = vmatpush1.bf16.msra.mxu0 0
    %810 = vmatprep.subr.bf16.mxu0 0
    %811 = vmatpush1.bf16.msra.mxu0 0
    %812 = vmatprep.subr.bf16.mxu0 0
    %813 = vmatpush1.bf16.msra.mxu0 0
    %814 = vmatprep.subr.bf16.mxu0 0
    %815 = vmatpush1.bf16.msra.mxu0 0
    %816 = vmatprep.subr.bf16.mxu0 0
    %817 = vmatpush1.bf16.msra.mxu0 0
    %818 = vmatprep.subr.bf16.mxu0 0
    %819 = vmatpush1.bf16.msra.mxu0 0
    %820 = vmatprep.mubr.bf16.mxu0 0
    %821 = vmatmul.mubr.bf16.gmra.mrb[0].mxu0 %v787
    %v822 = vpop.f32.mrb[0].mxu0
    %v823 = vadd.f32 0.0, %v822
    %v824 = vpop.f32.mrb[0].mxu0
    %v825 = vadd.f32 0.0, %v824
    %v826 = vpop.f32.mrb[0].mxu0
    %v827 = vpop.f32.mrb[0].mxu0
    %828 = vdwg.mxu0
    %829 = vmatprep.subr.bf16.mxu0 0
    %830 = vmatpush1.bf16.msra.mxu0 %v152
    %831 = vmatprep.subr.bf16.mxu0 0
    %832 = vmatpush1.bf16.msra.mxu0 %v155
    %833 = vmatprep.subr.bf16.mxu0 0
    %834 = vmatpush1.bf16.msra.mxu0 %v158
    %835 = vmatprep.subr.bf16.mxu0 0
    %836 = vmatpush1.bf16.msra.mxu0 %v161
    %837 = vmatprep.subr.bf16.mxu0 0
    %838 = vmatpush1.bf16.msra.mxu0 %v164
    %839 = vmatprep.subr.bf16.mxu0 0
    %840 = vmatpush1.bf16.msra.mxu0 %v167
    %841 = vmatprep.subr.bf16.mxu0 0
    %842 = vmatpush1.bf16.msra.mxu0 %v170
    %843 = vmatprep.subr.bf16.mxu0 0
    %844 = vmatpush1.bf16.msra.mxu0 %v173
    %845 = vmatprep.subr.bf16.mxu0 0
    %846 = vmatpush1.bf16.msra.mxu0 0
    %847 = vmatprep.subr.bf16.mxu0 0
    %848 = vmatpush1.bf16.msra.mxu0 0
    %849 = vmatprep.subr.bf16.mxu0 0
    %850 = vmatpush1.bf16.msra.mxu0 0
    %851 = vmatprep.subr.bf16.mxu0 0
    %852 = vmatpush1.bf16.msra.mxu0 0
    %853 = vmatprep.subr.bf16.mxu0 0
    %854 = vmatpush1.bf16.msra.mxu0 0
    %855 = vmatprep.subr.bf16.mxu0 0
    %856 = vmatpush1.bf16.msra.mxu0 0
    %857 = vmatprep.subr.bf16.mxu0 0
    %858 = vmatpush1.bf16.msra.mxu0 0
    %859 = vmatprep.subr.bf16.mxu0 0
    %860 = vmatpush1.bf16.msra.mxu0 0
    %861 = vmatprep.mubr.bf16.mxu0 0
    %862 = vmatmul.mubr.bf16.gmra.mrb[0].mxu0 %v787
    %v863 = vpop.f32.mrb[0].mxu0
    %v864 = vadd.f32 0.0, %v863
    %v865 = vpop.f32.mrb[0].mxu0
    %v866 = vpop.f32.mrb[0].mxu0
    %v867 = vpop.f32.mrb[0].mxu0
    %868 = vdwg.mxu0
    %v869 = vadd.f32 %v784, %v823
    %v870 = vxor.u32 %v869, 2147483648
    %v871 = vmul.f32 %v870, 1.442695
    %v872 = vpow.pop %v871
    %v873 = vadd.f32 %v872, 1.0
    %v874 = vrcp.pop %v873
    %v875 = vmul.f32 1.0, %v874
    %v876 = vadd.f32 %v785, %v825
    %v877 = vxor.u32 %v876, 2147483648
    %v878 = vmul.f32 %v877, 1.442695
    %v879 = vpow.pop %v878
    %v880 = vadd.f32 %v879, 1.0
    %v881 = vrcp.pop %v880
    %v882 = vmul.f32 1.0, %v881
    %v883 = vadd.f32 %v864, %v297
    %v884 = vmul.f32 %v875, %v883
    %v885 = vadd.f32 %v786, %v884
    %v886 = vtanh.pop %v885
    %v887 = vsub.f32 1.0, %v882
    %v888 = vmul.f32 %v887, %v886
    %v889 = vmul.f32 %v882, %v782
    %v890 = vadd.f32 %v888, %v889
    %s891 = sadd.s32 %s25, 5
    %v892 = vstv %s891
    %vm893 = vcmp.gt.s32.totalorder %v31, %v892
    %v894 = vsel %vm893, 1, 0
    %895 = vset.pattern.permute.xlu0 0
    %896 = vperm.xlu0 %895, %v894
    %v897 = vpop.permute.xlu0 %896
    %vm898 = vcmp.eq.s32.totalorder %v897, 1
    %v899 = vsel %vm898, %v890, %v782
    %s900 = scalar_lea.vmem %s1, 144
    %v901 = vld [vmem:[%s900] sm:$0xff]
    %v902 = vld [vmem:[%s900 + $0x8] sm:$0xff]
    %v903 = vld [vmem:[%s900 + $0x10] sm:$0xff]
    %v904 = vpack.c.bf16 %v899, %v899
    %905 = vmatprep.subr.bf16.mxu0 %v151
    %906 = vmatpush1.bf16.msra.mxu0 %v150
    %907 = vmatprep.subr.bf16.mxu0 %v154
    %908 = vmatpush1.bf16.msra.mxu0 %v153
    %909 = vmatprep.subr.bf16.mxu0 %v157
    %910 = vmatpush1.bf16.msra.mxu0 %v156
    %911 = vmatprep.subr.bf16.mxu0 %v160
    %912 = vmatpush1.bf16.msra.mxu0 %v159
    %913 = vmatprep.subr.bf16.mxu0 %v163
    %914 = vmatpush1.bf16.msra.mxu0 %v162
    %915 = vmatprep.subr.bf16.mxu0 %v166
    %916 = vmatpush1.bf16.msra.mxu0 %v165
    %917 = vmatprep.subr.bf16.mxu0 %v169
    %918 = vmatpush1.bf16.msra.mxu0 %v168
    %919 = vmatprep.subr.bf16.mxu0 %v172
    %920 = vmatpush1.bf16.msra.mxu0 %v171
    %921 = vmatprep.subr.bf16.mxu0 0
    %922 = vmatpush1.bf16.msra.mxu0 0
    %923 = vmatprep.subr.bf16.mxu0 0
    %924 = vmatpush1.bf16.msra.mxu0 0
    %925 = vmatprep.subr.bf16.mxu0 0
    %926 = vmatpush1.bf16.msra.mxu0 0
    %927 = vmatprep.subr.bf16.mxu0 0
    %928 = vmatpush1.bf16.msra.mxu0 0
    %929 = vmatprep.subr.bf16.mxu0 0
    %930 = vmatpush1.bf16.msra.mxu0 0
    %931 = vmatprep.subr.bf16.mxu0 0
    %932 = vmatpush1.bf16.msra.mxu0 0
    %933 = vmatprep.subr.bf16.mxu0 0
    %934 = vmatpush1.bf16.msra.mxu0 0
    %935 = vmatprep.subr.bf16.mxu0 0
    %936 = vmatpush1.bf16.msra.mxu0 0
    %937 = vmatprep.mubr.bf16.mxu0 0
    %938 = vmatmul.mubr.bf16.gmra.mrb[0].mxu0 %v904
    %v939 = vpop.f32.mrb[0].mxu0
    %v940 = vadd.f32 0.0, %v939
    %v941 = vpop.f32.mrb[0].mxu0
    %v942 = vadd.f32 0.0, %v941
    %v943 = vpop.f32.mrb[0].mxu0
    %v944 = vpop.f32.mrb[0].mxu0
    %945 = vdwg.mxu0
    %946 = vmatprep.subr.bf16.mxu0 0
    %947 = vmatpush1.bf16.msra.mxu0 %v152
    %948 = vmatprep.subr.bf16.mxu0 0
    %949 = vmatpush1.bf16.msra.mxu0 %v155
    %950 = vmatprep.subr.bf16.mxu0 0
    %951 = vmatpush1.bf16.msra.mxu0 %v158
    %952 = vmatprep.subr.bf16.mxu0 0
    %953 = vmatpush1.bf16.msra.mxu0 %v161
    %954 = vmatprep.subr.bf16.mxu0 0
    %955 = vmatpush1.bf16.msra.mxu0 %v164
    %956 = vmatprep.subr.bf16.mxu0 0
    %957 = vmatpush1.bf16.msra.mxu0 %v167
    %958 = vmatprep.subr.bf16.mxu0 0
    %959 = vmatpush1.bf16.msra.mxu0 %v170
    %960 = vmatprep.subr.bf16.mxu0 0
    %961 = vmatpush1.bf16.msra.mxu0 %v173
    %962 = vmatprep.subr.bf16.mxu0 0
    %963 = vmatpush1.bf16.msra.mxu0 0
    %964 = vmatprep.subr.bf16.mxu0 0
    %965 = vmatpush1.bf16.msra.mxu0 0
    %966 = vmatprep.subr.bf16.mxu0 0
    %967 = vmatpush1.bf16.msra.mxu0 0
    %968 = vmatprep.subr.bf16.mxu0 0
    %969 = vmatpush1.bf16.msra.mxu0 0
    %970 = vmatprep.subr.bf16.mxu0 0
    %971 = vmatpush1.bf16.msra.mxu0 0
    %972 = vmatprep.subr.bf16.mxu0 0
    %973 = vmatpush1.bf16.msra.mxu0 0
    %974 = vmatprep.subr.bf16.mxu0 0
    %975 = vmatpush1.bf16.msra.mxu0 0
    %976 = vmatprep.subr.bf16.mxu0 0
    %977 = vmatpush1.bf16.msra.mxu0 0
    %978 = vmatprep.mubr.bf16.mxu0 0
    %979 = vmatmul.mubr.bf16.gmra.mrb[0].mxu0 %v904
    %v980 = vpop.f32.mrb[0].mxu0
    %v981 = vadd.f32 0.0, %v980
    %v982 = vpop.f32.mrb[0].mxu0
    %v983 = vpop.f32.mrb[0].mxu0
    %v984 = vpop.f32.mrb[0].mxu0
    %985 = vdwg.mxu0
    %v986 = vadd.f32 %v901, %v940
    %v987 = vxor.u32 %v986, 2147483648
    %v988 = vmul.f32 %v987, 1.442695
    %v989 = vpow.pop %v988
    %v990 = vadd.f32 %v989, 1.0
    %v991 = vrcp.pop %v990
    %v992 = vmul.f32 1.0, %v991
    %v993 = vadd.f32 %v902, %v942
    %v994 = vxor.u32 %v993, 2147483648
    %v995 = vmul.f32 %v994, 1.442695
    %v996 = vpow.pop %v995
    %v997 = vadd.f32 %v996, 1.0
    %v998 = vrcp.pop %v997
    %v999 = vmul.f32 1.0, %v998
    %v1000 = vadd.f32 %v981, %v297
    %v1001 = vmul.f32 %v992, %v1000
    %v1002 = vadd.f32 %v903, %v1001
    %v1003 = vtanh.pop %v1002
    %v1004 = vsub.f32 1.0, %v999
    %v1005 = vmul.f32 %v1004, %v1003
    %v1006 = vmul.f32 %v999, %v899
    %v1007 = vadd.f32 %v1005, %v1006
    %s1008 = sadd.s32 %s25, 6
    %v1009 = vstv %s1008
    %vm1010 = vcmp.gt.s32.totalorder %v31, %v1009
    %v1011 = vsel %vm1010, 1, 0
    %1012 = vset.pattern.permute.xlu0 0
    %1013 = vperm.xlu0 %1012, %v1011
    %v1014 = vpop.permute.xlu0 %1013
    %vm1015 = vcmp.eq.s32.totalorder %v1014, 1
    %v1016 = vsel %vm1015, %v1007, %v899
    %s1017 = scalar_lea.vmem %s1, 168
    %v1018 = vld [vmem:[%s1017] sm:$0xff]
    %v1019 = vld [vmem:[%s1017 + $0x8] sm:$0xff]
    %v1020 = vld [vmem:[%s1017 + $0x10] sm:$0xff]
    %v1021 = vpack.c.bf16 %v1016, %v1016
    %1022 = vmatprep.subr.bf16.mxu0 %v151
    %1023 = vmatpush1.bf16.msra.mxu0 %v150
    %1024 = vmatprep.subr.bf16.mxu0 %v154
    %1025 = vmatpush1.bf16.msra.mxu0 %v153
    %1026 = vmatprep.subr.bf16.mxu0 %v157
    %1027 = vmatpush1.bf16.msra.mxu0 %v156
    %1028 = vmatprep.subr.bf16.mxu0 %v160
    %1029 = vmatpush1.bf16.msra.mxu0 %v159
    %1030 = vmatprep.subr.bf16.mxu0 %v163
    %1031 = vmatpush1.bf16.msra.mxu0 %v162
    %1032 = vmatprep.subr.bf16.mxu0 %v166
    %1033 = vmatpush1.bf16.msra.mxu0 %v165
    %1034 = vmatprep.subr.bf16.mxu0 %v169
    %1035 = vmatpush1.bf16.msra.mxu0 %v168
    %1036 = vmatprep.subr.bf16.mxu0 %v172
    %1037 = vmatpush1.bf16.msra.mxu0 %v171
    %1038 = vmatprep.subr.bf16.mxu0 0
    %1039 = vmatpush1.bf16.msra.mxu0 0
    %1040 = vmatprep.subr.bf16.mxu0 0
    %1041 = vmatpush1.bf16.msra.mxu0 0
    %1042 = vmatprep.subr.bf16.mxu0 0
    %1043 = vmatpush1.bf16.msra.mxu0 0
    %1044 = vmatprep.subr.bf16.mxu0 0
    %1045 = vmatpush1.bf16.msra.mxu0 0
    %1046 = vmatprep.subr.bf16.mxu0 0
    %1047 = vmatpush1.bf16.msra.mxu0 0
    %1048 = vmatprep.subr.bf16.mxu0 0
    %1049 = vmatpush1.bf16.msra.mxu0 0
    %1050 = vmatprep.subr.bf16.mxu0 0
    %1051 = vmatpush1.bf16.msra.mxu0 0
    %1052 = vmatprep.subr.bf16.mxu0 0
    %1053 = vmatpush1.bf16.msra.mxu0 0
    %1054 = vmatprep.mubr.bf16.mxu0 0
    %1055 = vmatmul.mubr.bf16.gmra.mrb[0].mxu0 %v1021
    %v1056 = vpop.f32.mrb[0].mxu0
    %v1057 = vadd.f32 0.0, %v1056
    %v1058 = vpop.f32.mrb[0].mxu0
    %v1059 = vadd.f32 0.0, %v1058
    %v1060 = vpop.f32.mrb[0].mxu0
    %v1061 = vpop.f32.mrb[0].mxu0
    %1062 = vdwg.mxu0
    %1063 = vmatprep.subr.bf16.mxu0 0
    %1064 = vmatpush1.bf16.msra.mxu0 %v152
    %1065 = vmatprep.subr.bf16.mxu0 0
    %1066 = vmatpush1.bf16.msra.mxu0 %v155
    %1067 = vmatprep.subr.bf16.mxu0 0
    %1068 = vmatpush1.bf16.msra.mxu0 %v158
    %1069 = vmatprep.subr.bf16.mxu0 0
    %1070 = vmatpush1.bf16.msra.mxu0 %v161
    %1071 = vmatprep.subr.bf16.mxu0 0
    %1072 = vmatpush1.bf16.msra.mxu0 %v164
    %1073 = vmatprep.subr.bf16.mxu0 0
    %1074 = vmatpush1.bf16.msra.mxu0 %v167
    %1075 = vmatprep.subr.bf16.mxu0 0
    %1076 = vmatpush1.bf16.msra.mxu0 %v170
    %1077 = vmatprep.subr.bf16.mxu0 0
    %1078 = vmatpush1.bf16.msra.mxu0 %v173
    %1079 = vmatprep.subr.bf16.mxu0 0
    %1080 = vmatpush1.bf16.msra.mxu0 0
    %1081 = vmatprep.subr.bf16.mxu0 0
    %1082 = vmatpush1.bf16.msra.mxu0 0
    %1083 = vmatprep.subr.bf16.mxu0 0
    %1084 = vmatpush1.bf16.msra.mxu0 0
    %1085 = vmatprep.subr.bf16.mxu0 0
    %1086 = vmatpush1.bf16.msra.mxu0 0
    %1087 = vmatprep.subr.bf16.mxu0 0
    %1088 = vmatpush1.bf16.msra.mxu0 0
    %1089 = vmatprep.subr.bf16.mxu0 0
    %1090 = vmatpush1.bf16.msra.mxu0 0
    %1091 = vmatprep.subr.bf16.mxu0 0
    %1092 = vmatpush1.bf16.msra.mxu0 0
    %1093 = vmatprep.subr.bf16.mxu0 0
    %1094 = vmatpush1.bf16.msra.mxu0 0
    %1095 = vmatprep.mubr.bf16.mxu0 0
    %1096 = vmatmul.mubr.bf16.gmra.mrb[0].mxu0 %v1021
    %v1097 = vpop.f32.mrb[0].mxu0
    %v1098 = vadd.f32 0.0, %v1097
    %v1099 = vpop.f32.mrb[0].mxu0
    %v1100 = vpop.f32.mrb[0].mxu0
    %v1101 = vpop.f32.mrb[0].mxu0
    %1102 = vdwg.mxu0
    %v1103 = vadd.f32 %v1018, %v1057
    %v1104 = vxor.u32 %v1103, 2147483648
    %v1105 = vmul.f32 %v1104, 1.442695
    %v1106 = vpow.pop %v1105
    %v1107 = vadd.f32 %v1106, 1.0
    %v1108 = vrcp.pop %v1107
    %v1109 = vmul.f32 1.0, %v1108
    %v1110 = vadd.f32 %v1019, %v1059
    %v1111 = vxor.u32 %v1110, 2147483648
    %v1112 = vmul.f32 %v1111, 1.442695
    %v1113 = vpow.pop %v1112
    %v1114 = vadd.f32 %v1113, 1.0
    %v1115 = vrcp.pop %v1114
    %v1116 = vmul.f32 1.0, %v1115
    %v1117 = vadd.f32 %v1098, %v297
    %v1118 = vmul.f32 %v1109, %v1117
    %v1119 = vadd.f32 %v1020, %v1118
    %v1120 = vtanh.pop %v1119
    %v1121 = vsub.f32 1.0, %v1116
    %v1122 = vmul.f32 %v1121, %v1120
    %v1123 = vmul.f32 %v1116, %v1016
    %v1124 = vadd.f32 %v1122, %v1123
    %s1125 = sadd.s32 %s25, 7
    %v1126 = vstv %s1125
    %vm1127 = vcmp.gt.s32.totalorder %v31, %v1126
    %v1128 = vsel %vm1127, 1, 0
    %1129 = vset.pattern.permute.xlu0 0
    %1130 = vperm.xlu0 %1129, %v1128
    %v1131 = vpop.permute.xlu0 %1130
    %vm1132 = vcmp.eq.s32.totalorder %v1131, 1
    %v1133 = vsel %vm1132, %v1124, %v1016
    %1134 = vst [vmem:[#allocation2] sm:$0xff] %v1133
  $region25: #{encoder_forward.1} parent=0 // pred_fallthru
    _
  // Predicated region
  $region26: #{encoder_forward.1} parent=0 // pred_check
    %p1135 = pneg %p20
  $region27: #{encoder_forward.1} parent=0 // pred_check_branch
    %1137 = sbr.rel (%p1135) target = $region29
  $region28: #{encoder_forward.1} parent=0 // pred_region
    %v1138 = vld [vmem:[#allocation2] sm:$0xff]
    %1139 = vst [vmem:[%s5] sm:$0xff] %v1138
  $region29: #{encoder_forward.1} parent=0 // pred_fallthru
    _
  // Predicated region
  $region30: #{encoder_forward.1} parent=0 // pred_check
    _
  $region31: #{encoder_forward.1} parent=0 // pred_check_branch
    %1141 = sbr.rel (0) target = $region33
  $region32: #{encoder_forward.1} parent=0 // pred_region
    _
  $region33: #{encoder_forward.1} parent=0 // pred_fallthru
    _
  // Predicated region
  $region34: #{encoder_forward.1} parent=0 // pred_check
    _
  $region35: #{encoder_forward.1} parent=0 // pred_check_branch
    %1143 = sbr.rel (0) target = $region37
  $region36: #{encoder_forward.1} parent=0 // pred_region
    _
  $region37: #{encoder_forward.1} parent=0 // pred_fallthru
    _

</llo_original>
